<compile_context>
chip_gen: v7x
topology: tpu7x:2x2x1
jax: 0.10.0
libtpu: 0.0.40
codegen_flags: <defaults>
</compile_context>

<pallas_src>
import jax
import jax.numpy as jnp
from jax.experimental import pallas as pl
from jax.experimental.pallas import tpu as pltpu

EPS = 1e-5


def bn_relu_conv1x1_kernel(x_ref, ss_ref, w_ref, o_ref):
    # x_ref:  (C_in, HW)     f32   channels-major pixel matrix (full array)
    # ss_ref: (C_in, 2)      f32   col 0 = folded BN scale, col 1 = folded BN shift
    # w_ref:  (C_out, C_in)  f32   1x1 conv weight (cast to bf16 here, not in wrapper)
    # o_ref:  (C_out, HW)    f32
    scale = ss_ref[:, 0:1]                                # (C_in, 1)
    shift = ss_ref[:, 1:2]                                # (C_in, 1)
    xn = x_ref[...] * scale + shift                       # folded BN (VPU only)
    xr = jnp.maximum(xn, 0.0).astype(jnp.bfloat16)        # ReLU + bf16 for native MXU path
    w = w_ref[...].astype(jnp.bfloat16)                   # in-kernel cast (no wrapper fusion)
    o_ref[...] = jnp.dot(
        w, xr, preferred_element_type=jnp.float32         # f32 accumulation
    ).astype(o_ref.dtype)


@jax.jit
def bn_relu_conv1x1(x_nchw, gamma, beta, running_mean, running_var, conv_weight):
    """x_nchw: (1, C_in, H, W); conv_weight: (C_out, C_in, 1, 1). Returns (1, C_out, H, W)."""
    N, C_in, H, W = x_nchw.shape
    assert N == 1, "module spec is batch=1 (channels-major reshape is free only for N=1)"
    C_out = conv_weight.shape[0]
    HW = H * W

    # Free reshapes (contiguous): NCHW -> (C_in, HW); 1x1 weight -> (C_out, C_in), kept f32.
    x2d = x_nchw.reshape(C_in, HW)
    w2d = conv_weight.reshape(C_out, C_in)

    # Fold BatchNorm (inference form, running stats) into per-channel scale/shift and
    # pack both into one (C_in, 2) operand -> a single small DMA into the kernel.
    scale_v = gamma * jax.lax.rsqrt(running_var + EPS)
    shift_v = beta - running_mean * scale_v
    scale_shift = jnp.stack([scale_v, shift_v], axis=1)   # (C_in, 2)

    cost = pl.CostEstimate(
        flops=2 * HW * C_in * C_out,                      # ~43 MFLOP
        transcendentals=0,                                # rsqrt folded out of the kernel
        bytes_accessed=(C_in * HW * 4                     # x
                        + C_out * C_in * 4                # weight (f32 in)
                        + C_out * HW * 4                  # output
                        + C_in * 2 * 4),                  # packed scale/shift
    )

    # Single block covering the full arrays (block == array dims, so the (8,128)
    # constraint does not apply); grid=(1,) -> one pipeline step, no tail tile.
    out2d = pl.pallas_call(
        bn_relu_conv1x1_kernel,
        out_shape=jax.ShapeDtypeStruct((C_out, HW), jnp.float32),
        grid=(1,),
        in_specs=[
            pl.BlockSpec((C_in, HW), lambda i: (0, 0)),
            pl.BlockSpec((C_in, 2), lambda i: (0, 0)),
            pl.BlockSpec((C_out, C_in), lambda i: (0, 0)),
        ],
        out_specs=pl.BlockSpec((C_out, HW), lambda i: (0, 0)),
        cost_estimate=cost,
    )(x2d, scale_shift, w2d)

    # Free reshape: (C_out, HW) -> (1, C_out, H, W).
    return out2d.reshape(N, C_out, H, W)


if __name__ == "__main__":
    # Shapes implied by the module: x274 = randn([1, 864, 14, 14]); Conv2d(864 -> 128, 1x1).
    N, C_in, H, W = 1, 864, 14, 14
    C_out = 128

    key = jax.random.PRNGKey(0)
    kx, kg, kb, km, kv, kw = jax.random.split(key, 6)

    x = jax.random.normal(kx, (N, C_in, H, W), dtype=jnp.float32)

    # BatchNorm2d(864) affine params + running stats (inference form),
    # Conv2d(864 -> 128, 1x1, bias=False).
    gamma = jax.random.normal(kg, (C_in,), dtype=jnp.float32) * 0.1 + 1.0
    beta = jax.random.normal(kb, (C_in,), dtype=jnp.float32) * 0.1
    running_mean = jax.random.normal(km, (C_in,), dtype=jnp.float32) * 0.1
    running_var = jax.random.uniform(kv, (C_in,), dtype=jnp.float32, minval=0.5, maxval=1.5)
    conv_weight = jax.random.normal(kw, (C_out, C_in, 1, 1), dtype=jnp.float32) * 0.02

    out = bn_relu_conv1x1(x, gamma, beta, running_mean, running_var, conv_weight)
    out = jax.block_until_ready(out)

    # Plain-JAX f32 reference of the fused op.
    xn = (x - running_mean[None, :, None, None]) * jax.lax.rsqrt(
        running_var[None, :, None, None] + EPS
    ) * gamma[None, :, None, None] + beta[None, :, None, None]
    xr = jnp.maximum(xn, 0.0)
    ref = jnp.einsum("nchw,oc->nohw", xr, conv_weight.reshape(C_out, C_in))

    assert out.shape == (N, C_out, H, W)
    # Tolerance loosened vs pure f32: MXU operands are bf16 (K=864), accumulation is f32.
    max_err = float(jnp.max(jnp.abs(out - ref)))
    assert max_err < 3e-2, f"max abs err {max_err}"

    print("KERNEL_OK")
</pallas_src>

<mosaic_0001>
module attributes {stable_mosaic.version = 11 : i64} {
  func.func @bn_relu_conv1x1_kernel(%arg0: i32, %arg1: memref<864x196xf32, #tpu.memory_space<vmem>>, %arg2: memref<864x2xf32, #tpu.memory_space<vmem>>, %arg3: memref<128x864xf32, #tpu.memory_space<vmem>>, %arg4: memref<128x196xf32, #tpu.memory_space<vmem>>) attributes {dimension_semantics = [#tpu.dimension_semantics<arbitrary>], iteration_bounds = array<i64: 1>, scalar_prefetch = 0 : i64, scratch_operands = 0 : i64, tpu.core_type = #tpu.core_type<tc>, window_params = [{pipeline_mode = #tpu.pipeline_mode<synchronous>, transform_indices = @transform_0, window_bounds = array<i64: 864, 196>}, {pipeline_mode = #tpu.pipeline_mode<synchronous>, transform_indices = @transform_1, window_bounds = array<i64: 864, 2>}, {pipeline_mode = #tpu.pipeline_mode<synchronous>, transform_indices = @transform_2, window_bounds = array<i64: 128, 864>}, {pipeline_mode = #tpu.pipeline_mode<synchronous>, transform_indices = @transform_3, window_bounds = array<i64: 128, 196>}]} {
    %c0 = arith.constant 0 : index
    %c0_0 = arith.constant 0 : index
    %0 = vector.load %arg2[%c0, %c0_0] : memref<864x2xf32, #tpu.memory_space<vmem>>, vector<864x1xf32>
    %c0_1 = arith.constant 0 : index
    %c1 = arith.constant 1 : index
    %1 = vector.load %arg2[%c0_1, %c1] : memref<864x2xf32, #tpu.memory_space<vmem>>, vector<864x1xf32>
    %c0_2 = arith.constant 0 : index
    %c0_3 = arith.constant 0 : index
    %2 = vector.load %arg1[%c0_2, %c0_3] : memref<864x196xf32, #tpu.memory_space<vmem>>, vector<864x196xf32>
    %3 = vector.broadcast %0 : vector<864x1xf32> to vector<864x196xf32>
    %4 = arith.mulf %2, %3 : vector<864x196xf32>
    %5 = vector.broadcast %1 : vector<864x1xf32> to vector<864x196xf32>
    %6 = arith.addf %4, %5 : vector<864x196xf32>
    %cst = arith.constant 0.000000e+00 : f32
    %7 = vector.broadcast %cst : f32 to vector<864x196xf32>
    %8 = arith.maximumf %6, %7 : vector<864x196xf32>
    %9 = arith.truncf %8 : vector<864x196xf32> to vector<864x196xbf16>
    %c0_4 = arith.constant 0 : index
    %c0_5 = arith.constant 0 : index
    %10 = vector.load %arg3[%c0_4, %c0_5] : memref<128x864xf32, #tpu.memory_space<vmem>>, vector<128x864xf32>
    %11 = arith.truncf %10 : vector<128x864xf32> to vector<128x864xbf16>
    %cst_6 = arith.constant dense<0.000000e+00> : vector<128x196xf32>
    %12 = tpu.matmul %11, %9, %cst_6 {dimension_numbers = #tpu.dot_dimension_numbers<[1], [0], [0], [1], [0, 0, 1, 1], [], []>} : vector<128x864xbf16>, vector<864x196xbf16>, vector<128x196xf32> -> vector<128x196xf32>
    %c0_7 = arith.constant 0 : index
    %c0_8 = arith.constant 0 : index
    %13 = vector.load %arg4[%c0_7, %c0_8] : memref<128x196xf32, #tpu.memory_space<vmem>>, vector<128x196xf32>
    tpu.vector_store %arg4[%c0_7, %c0_8], %12 {strides = array<i32>} : memref<128x196xf32, #tpu.memory_space<vmem>>, vector<128x196xf32>,
    return
  }
  func.func @transform_0(%arg0: i32) -> (i32, i32) {
    %c0_i32 = arith.constant 0 : i32
    %c0_i32_0 = arith.constant 0 : i32
    %c0_i32_1 = arith.constant 0 : i32
    return %c0_i32, %c0_i32_0 : i32, i32
  }
  func.func @transform_1(%arg0: i32) -> (i32, i32) {
    %c0_i32 = arith.constant 0 : i32
    %c0_i32_0 = arith.constant 0 : i32
    %c0_i32_1 = arith.constant 0 : i32
    return %c0_i32, %c0_i32_0 : i32, i32
  }
  func.func @transform_2(%arg0: i32) -> (i32, i32) {
    %c0_i32 = arith.constant 0 : i32
    %c0_i32_0 = arith.constant 0 : i32
    %c0_i32_1 = arith.constant 0 : i32
    return %c0_i32, %c0_i32_0 : i32, i32
  }
  func.func @transform_3(%arg0: i32) -> (i32, i32) {
    %c0_i32 = arith.constant 0 : i32
    %c0_i32_0 = arith.constant 0 : i32
    %c0_i32_1 = arith.constant 0 : i32
    return %c0_i32, %c0_i32_0 : i32, i32
  }
}

</mosaic_0001>

<llo_original>
// kernel: bn_relu_conv1x1.1
$region0: #{bn_relu_conv1x1.1}
  #allocation0 [shape = 'u32[]', space=smem, size = 0x4, offset = 0x4, fixed_abs, tag = 'smem constant byte address 0x4 - core index']
  #allocation1 [shape = 'u32[144,128]{1,0:T(1,128)}', space=vmem, size = 0x12000, scoped, tag = 'internal scratch']
  %s0 = inlined_call_operand.vmem [shape: f32[864,196], index: 0, kind: input, shape index: {}]
  %s1 = inlined_call_operand.vmem [shape: f32[864,2], index: 1, kind: input, shape index: {}]
  %s2 = inlined_call_operand.vmem [shape: f32[128,864], index: 2, kind: input, shape index: {}]
  %s3 = inlined_call_operand.vmem [shape: f32[128,196], index: 3, kind: output, shape index: {}]
  %s4 = sld [smem:[#allocation0]]
  $region22: #{bn_relu_conv1x1.1} parent=0
    _
  %s6 = ssub.s32 1, %s4
  %s7 = scalar_select 0, %s6, %s4
  // Predicated region
  $region2: #{bn_relu_conv1x1.1} parent=0 // pred_check
    _
  $region3: #{bn_relu_conv1x1.1} parent=0 // pred_check_branch
    %9 = sbr.rel (0) target = $region5
  $region4: #{bn_relu_conv1x1.1} parent=0 // pred_region
    _
  $region5: #{bn_relu_conv1x1.1} parent=0 // pred_fallthru
    _
  // Predicated region
  $region6: #{bn_relu_conv1x1.1} parent=0 // pred_check
    _
  $region7: #{bn_relu_conv1x1.1} parent=0 // pred_check_branch
    %11 = sbr.rel (0) target = $region9
  $region8: #{bn_relu_conv1x1.1} parent=0 // pred_region
    _
  $region9: #{bn_relu_conv1x1.1} parent=0 // pred_fallthru
    _
  // Predicated region
  $region10: #{bn_relu_conv1x1.1} parent=0 // pred_check
    _
  $region11: #{bn_relu_conv1x1.1} parent=0 // pred_check_branch
    %13 = sbr.rel (0) target = $region13
  $region12: #{bn_relu_conv1x1.1} parent=0 // pred_region
    _
  $region13: #{bn_relu_conv1x1.1} parent=0 // pred_fallthru
    _
  %v15 = vld [vmem:[%s1] sm:$0xff]
  %v16 = vld [vmem:[%s1 + $0x8] sm:$0xff]
  %v17 = vld [vmem:[%s1 + $0x10] sm:$0xff]
  %v18 = vld [vmem:[%s1 + $0x18] sm:$0xff]
  %v19 = vld [vmem:[%s1 + $0x20] sm:$0xff]
  %v20 = vld [vmem:[%s1 + $0x28] sm:$0xff]
  %v21 = vld [vmem:[%s1 + $0x30] sm:$0xff]
  %v22 = vld [vmem:[%s1 + $0x38] sm:$0xff]
  %v23 = vld [vmem:[%s1 + $0x40] sm:$0xff]
  %v24 = vld [vmem:[%s1 + $0x48] sm:$0xff]
  %v25 = vld [vmem:[%s1 + $0x50] sm:$0xff]
  %v26 = vld [vmem:[%s1 + $0x58] sm:$0xff]
  %v27 = vld [vmem:[%s1 + $0x60] sm:$0xff]
  %v28 = vld [vmem:[%s1 + $0x68] sm:$0xff]
  %v29 = vld [vmem:[%s1 + $0x70] sm:$0xff]
  %v30 = vld [vmem:[%s1 + $0x78] sm:$0xff]
  %v31 = vld [vmem:[%s1 + $0x80] sm:$0xff]
  %v32 = vld [vmem:[%s1 + $0x88] sm:$0xff]
  %v33 = vld [vmem:[%s1 + $0x90] sm:$0xff]
  %v34 = vld [vmem:[%s1 + $0x98] sm:$0xff]
  %v35 = vld [vmem:[%s1 + $0xa0] sm:$0xff]
  %v36 = vld [vmem:[%s1 + $0xa8] sm:$0xff]
  %v37 = vld [vmem:[%s1 + $0xb0] sm:$0xff]
  %v38 = vld [vmem:[%s1 + $0xb8] sm:$0xff]
  %v39 = vld [vmem:[%s1 + $0xc0] sm:$0xff]
  %v40 = vld [vmem:[%s1 + $0xc8] sm:$0xff]
  %v41 = vld [vmem:[%s1 + $0xd0] sm:$0xff]
  %v42 = vld [vmem:[%s1 + $0xd8] sm:$0xff]
  %v43 = vld [vmem:[%s1 + $0xe0] sm:$0xff]
  %v44 = vld [vmem:[%s1 + $0xe8] sm:$0xff]
  %v45 = vld [vmem:[%s1 + $0xf0] sm:$0xff]
  %v46 = vld [vmem:[%s1 + $0xf8] sm:$0xff]
  %v47 = vld [vmem:[%s1 + $0x100] sm:$0xff]
  %v48 = vld [vmem:[%s1 + $0x108] sm:$0xff]
  %v49 = vld [vmem:[%s1 + $0x110] sm:$0xff]
  %v50 = vld [vmem:[%s1 + $0x118] sm:$0xff]
  %v51 = vld [vmem:[%s1 + $0x120] sm:$0xff]
  %v52 = vld [vmem:[%s1 + $0x128] sm:$0xff]
  %v53 = vld [vmem:[%s1 + $0x130] sm:$0xff]
  %v54 = vld [vmem:[%s1 + $0x138] sm:$0xff]
  %v55 = vld [vmem:[%s1 + $0x140] sm:$0xff]
  %v56 = vld [vmem:[%s1 + $0x148] sm:$0xff]
  %v57 = vld [vmem:[%s1 + $0x150] sm:$0xff]
  %v58 = vld [vmem:[%s1 + $0x158] sm:$0xff]
  %v59 = vld [vmem:[%s1 + $0x160] sm:$0xff]
  %v60 = vld [vmem:[%s1 + $0x168] sm:$0xff]
  %v61 = vld [vmem:[%s1 + $0x170] sm:$0xff]
  %v62 = vld [vmem:[%s1 + $0x178] sm:$0xff]
  %v63 = vld [vmem:[%s1 + $0x180] sm:$0xff]
  %v64 = vld [vmem:[%s1 + $0x188] sm:$0xff]
  %v65 = vld [vmem:[%s1 + $0x190] sm:$0xff]
  %v66 = vld [vmem:[%s1 + $0x198] sm:$0xff]
  %v67 = vld [vmem:[%s1 + $0x1a0] sm:$0xff]
  %v68 = vld [vmem:[%s1 + $0x1a8] sm:$0xff]
  %v69 = vld [vmem:[%s1 + $0x1b0] sm:$0xff]
  %v70 = vld [vmem:[%s1 + $0x1b8] sm:$0xff]
  %v71 = vld [vmem:[%s1 + $0x1c0] sm:$0xff]
  %v72 = vld [vmem:[%s1 + $0x1c8] sm:$0xff]
  %v73 = vld [vmem:[%s1 + $0x1d0] sm:$0xff]
  %v74 = vld [vmem:[%s1 + $0x1d8] sm:$0xff]
  %v75 = vld [vmem:[%s1 + $0x1e0] sm:$0xff]
  %v76 = vld [vmem:[%s1 + $0x1e8] sm:$0xff]
  %v77 = vld [vmem:[%s1 + $0x1f0] sm:$0xff]
  %v78 = vld [vmem:[%s1 + $0x1f8] sm:$0xff]
  %v79 = vld [vmem:[%s1 + $0x200] sm:$0xff]
  %v80 = vld [vmem:[%s1 + $0x208] sm:$0xff]
  %v81 = vld [vmem:[%s1 + $0x210] sm:$0xff]
  %v82 = vld [vmem:[%s1 + $0x218] sm:$0xff]
  %v83 = vld [vmem:[%s1 + $0x220] sm:$0xff]
  %v84 = vld [vmem:[%s1 + $0x228] sm:$0xff]
  %v85 = vld [vmem:[%s1 + $0x230] sm:$0xff]
  %v86 = vld [vmem:[%s1 + $0x238] sm:$0xff]
  %v87 = vld [vmem:[%s1 + $0x240] sm:$0xff]
  %v88 = vld [vmem:[%s1 + $0x248] sm:$0xff]
  %v89 = vld [vmem:[%s1 + $0x250] sm:$0xff]
  %v90 = vld [vmem:[%s1 + $0x258] sm:$0xff]
  %v91 = vld [vmem:[%s1 + $0x260] sm:$0xff]
  %v92 = vld [vmem:[%s1 + $0x268] sm:$0xff]
  %v93 = vld [vmem:[%s1 + $0x270] sm:$0xff]
  %v94 = vld [vmem:[%s1 + $0x278] sm:$0xff]
  %v95 = vld [vmem:[%s1 + $0x280] sm:$0xff]
  %v96 = vld [vmem:[%s1 + $0x288] sm:$0xff]
  %v97 = vld [vmem:[%s1 + $0x290] sm:$0xff]
  %v98 = vld [vmem:[%s1 + $0x298] sm:$0xff]
  %v99 = vld [vmem:[%s1 + $0x2a0] sm:$0xff]
  %v100 = vld [vmem:[%s1 + $0x2a8] sm:$0xff]
  %v101 = vld [vmem:[%s1 + $0x2b0] sm:$0xff]
  %v102 = vld [vmem:[%s1 + $0x2b8] sm:$0xff]
  %v103 = vld [vmem:[%s1 + $0x2c0] sm:$0xff]
  %v104 = vld [vmem:[%s1 + $0x2c8] sm:$0xff]
  %v105 = vld [vmem:[%s1 + $0x2d0] sm:$0xff]
  %v106 = vld [vmem:[%s1 + $0x2d8] sm:$0xff]
  %v107 = vld [vmem:[%s1 + $0x2e0] sm:$0xff]
  %v108 = vld [vmem:[%s1 + $0x2e8] sm:$0xff]
  %v109 = vld [vmem:[%s1 + $0x2f0] sm:$0xff]
  %v110 = vld [vmem:[%s1 + $0x2f8] sm:$0xff]
  %v111 = vld [vmem:[%s1 + $0x300] sm:$0xff]
  %v112 = vld [vmem:[%s1 + $0x308] sm:$0xff]
  %v113 = vld [vmem:[%s1 + $0x310] sm:$0xff]
  %v114 = vld [vmem:[%s1 + $0x318] sm:$0xff]
  %v115 = vld [vmem:[%s1 + $0x320] sm:$0xff]
  %v116 = vld [vmem:[%s1 + $0x328] sm:$0xff]
  %v117 = vld [vmem:[%s1 + $0x330] sm:$0xff]
  %v118 = vld [vmem:[%s1 + $0x338] sm:$0xff]
  %v119 = vld [vmem:[%s1 + $0x340] sm:$0xff]
  %v120 = vld [vmem:[%s1 + $0x348] sm:$0xff]
  %v121 = vld [vmem:[%s1 + $0x350] sm:$0xff]
  %v122 = vld [vmem:[%s1 + $0x358] sm:$0xff]
  %v123 = vld [vmem:[%s0] sm:$0xff]
  %v124 = vld [vmem:[%s0 + $0x8] sm:$0xff]
  %v125 = vld [vmem:[%s0 + $0x10] sm:$0xff]
  %v126 = vld [vmem:[%s0 + $0x18] sm:$0xff]
  %v127 = vld [vmem:[%s0 + $0x20] sm:$0xff]
  %v128 = vld [vmem:[%s0 + $0x28] sm:$0xff]
  %v129 = vld [vmem:[%s0 + $0x30] sm:$0xff]
  %v130 = vld [vmem:[%s0 + $0x38] sm:$0xff]
  %v131 = vld [vmem:[%s0 + $0x40] sm:$0xff]
  %v132 = vld [vmem:[%s0 + $0x48] sm:$0xff]
  %v133 = vld [vmem:[%s0 + $0x50] sm:$0xff]
  %v134 = vld [vmem:[%s0 + $0x58] sm:$0xff]
  %v135 = vld [vmem:[%s0 + $0x60] sm:$0xff]
  %v136 = vld [vmem:[%s0 + $0x68] sm:$0xff]
  %v137 = vld [vmem:[%s0 + $0x70] sm:$0xff]
  %v138 = vld [vmem:[%s0 + $0x78] sm:$0xff]
  %v139 = vld [vmem:[%s0 + $0x80] sm:$0xff]
  %v140 = vld [vmem:[%s0 + $0x88] sm:$0xff]
  %v141 = vld [vmem:[%s0 + $0x90] sm:$0xff]
  %v142 = vld [vmem:[%s0 + $0x98] sm:$0xff]
  %v143 = vld [vmem:[%s0 + $0xa0] sm:$0xff]
  %v144 = vld [vmem:[%s0 + $0xa8] sm:$0xff]
  %v145 = vld [vmem:[%s0 + $0xb0] sm:$0xff]
  %v146 = vld [vmem:[%s0 + $0xb8] sm:$0xff]
  %v147 = vld [vmem:[%s0 + $0xc0] sm:$0xff]
  %v148 = vld [vmem:[%s0 + $0xc8] sm:$0xff]
  %v149 = vld [vmem:[%s0 + $0xd0] sm:$0xff]
  %v150 = vld [vmem:[%s0 + $0xd8] sm:$0xff]
  %v151 = vld [vmem:[%s0 + $0xe0] sm:$0xff]
  %v152 = vld [vmem:[%s0 + $0xe8] sm:$0xff]
  %v153 = vld [vmem:[%s0 + $0xf0] sm:$0xff]
  %v154 = vld [vmem:[%s0 + $0xf8] sm:$0xff]
  %v155 = vld [vmem:[%s0 + $0x100] sm:$0xff]
  %v156 = vld [vmem:[%s0 + $0x108] sm:$0xff]
  %v157 = vld [vmem:[%s0 + $0x110] sm:$0xff]
  %v158 = vld [vmem:[%s0 + $0x118] sm:$0xff]
  %v159 = vld [vmem:[%s0 + $0x120] sm:$0xff]
  %v160 = vld [vmem:[%s0 + $0x128] sm:$0xff]
  %v161 = vld [vmem:[%s0 + $0x130] sm:$0xff]
  %v162 = vld [vmem:[%s0 + $0x138] sm:$0xff]
  %v163 = vld [vmem:[%s0 + $0x140] sm:$0xff]
  %v164 = vld [vmem:[%s0 + $0x148] sm:$0xff]
  %v165 = vld [vmem:[%s0 + $0x150] sm:$0xff]
  %v166 = vld [vmem:[%s0 + $0x158] sm:$0xff]
  %v167 = vld [vmem:[%s0 + $0x160] sm:$0xff]
  %v168 = vld [vmem:[%s0 + $0x168] sm:$0xff]
  %v169 = vld [vmem:[%s0 + $0x170] sm:$0xff]
  %v170 = vld [vmem:[%s0 + $0x178] sm:$0xff]
  %v171 = vld [vmem:[%s0 + $0x180] sm:$0xff]
  %v172 = vld [vmem:[%s0 + $0x188] sm:$0xff]
  %v173 = vld [vmem:[%s0 + $0x190] sm:$0xff]
  %v174 = vld [vmem:[%s0 + $0x198] sm:$0xff]
  %v175 = vld [vmem:[%s0 + $0x1a0] sm:$0xff]
  %v176 = vld [vmem:[%s0 + $0x1a8] sm:$0xff]
  %v177 = vld [vmem:[%s0 + $0x1b0] sm:$0xff]
  %v178 = vld [vmem:[%s0 + $0x1b8] sm:$0xff]
  %v179 = vld [vmem:[%s0 + $0x1c0] sm:$0xff]
  %v180 = vld [vmem:[%s0 + $0x1c8] sm:$0xff]
  %v181 = vld [vmem:[%s0 + $0x1d0] sm:$0xff]
  %v182 = vld [vmem:[%s0 + $0x1d8] sm:$0xff]
  %v183 = vld [vmem:[%s0 + $0x1e0] sm:$0xff]
  %v184 = vld [vmem:[%s0 + $0x1e8] sm:$0xff]
  %v185 = vld [vmem:[%s0 + $0x1f0] sm:$0xff]
  %v186 = vld [vmem:[%s0 + $0x1f8] sm:$0xff]
  %v187 = vld [vmem:[%s0 + $0x200] sm:$0xff]
  %v188 = vld [vmem:[%s0 + $0x208] sm:$0xff]
  %v189 = vld [vmem:[%s0 + $0x210] sm:$0xff]
  %v190 = vld [vmem:[%s0 + $0x218] sm:$0xff]
  %v191 = vld [vmem:[%s0 + $0x220] sm:$0xff]
  %v192 = vld [vmem:[%s0 + $0x228] sm:$0xff]
  %v193 = vld [vmem:[%s0 + $0x230] sm:$0xff]
  %v194 = vld [vmem:[%s0 + $0x238] sm:$0xff]
  %v195 = vld [vmem:[%s0 + $0x240] sm:$0xff]
  %v196 = vld [vmem:[%s0 + $0x248] sm:$0xff]
  %v197 = vld [vmem:[%s0 + $0x250] sm:$0xff]
  %v198 = vld [vmem:[%s0 + $0x258] sm:$0xff]
  %v199 = vld [vmem:[%s0 + $0x260] sm:$0xff]
  %v200 = vld [vmem:[%s0 + $0x268] sm:$0xff]
  %v201 = vld [vmem:[%s0 + $0x270] sm:$0xff]
  %v202 = vld [vmem:[%s0 + $0x278] sm:$0xff]
  %v203 = vld [vmem:[%s0 + $0x280] sm:$0xff]
  %v204 = vld [vmem:[%s0 + $0x288] sm:$0xff]
  %v205 = vld [vmem:[%s0 + $0x290] sm:$0xff]
  %v206 = vld [vmem:[%s0 + $0x298] sm:$0xff]
  %v207 = vld [vmem:[%s0 + $0x2a0] sm:$0xff]
  %v208 = vld [vmem:[%s0 + $0x2a8] sm:$0xff]
  %v209 = vld [vmem:[%s0 + $0x2b0] sm:$0xff]
  %v210 = vld [vmem:[%s0 + $0x2b8] sm:$0xff]
  %v211 = vld [vmem:[%s0 + $0x2c0] sm:$0xff]
  %v212 = vld [vmem:[%s0 + $0x2c8] sm:$0xff]
  %v213 = vld [vmem:[%s0 + $0x2d0] sm:$0xff]
  %v214 = vld [vmem:[%s0 + $0x2d8] sm:$0xff]
  %v215 = vld [vmem:[%s0 + $0x2e0] sm:$0xff]
  %v216 = vld [vmem:[%s0 + $0x2e8] sm:$0xff]
  %v217 = vld [vmem:[%s0 + $0x2f0] sm:$0xff]
  %v218 = vld [vmem:[%s0 + $0x2f8] sm:$0xff]
  %v219 = vld [vmem:[%s0 + $0x300] sm:$0xff]
  %v220 = vld [vmem:[%s0 + $0x308] sm:$0xff]
  %v221 = vld [vmem:[%s0 + $0x310] sm:$0xff]
  %v222 = vld [vmem:[%s0 + $0x318] sm:$0xff]
  %v223 = vld [vmem:[%s0 + $0x320] sm:$0xff]
  %v224 = vld [vmem:[%s0 + $0x328] sm:$0xff]
  %v225 = vld [vmem:[%s0 + $0x330] sm:$0xff]
  %v226 = vld [vmem:[%s0 + $0x338] sm:$0xff]
  %v227 = vld [vmem:[%s0 + $0x340] sm:$0xff]
  %v228 = vld [vmem:[%s0 + $0x348] sm:$0xff]
  %v229 = vld [vmem:[%s0 + $0x350] sm:$0xff]
  %v230 = vld [vmem:[%s0 + $0x358] sm:$0xff]
  %v231 = vld [vmem:[%s0 + $0x360] sm:$0xff]
  %v232 = vld [vmem:[%s0 + $0x368] sm:$0xff]
  %v233 = vld [vmem:[%s0 + $0x370] sm:$0xff]
  %v234 = vld [vmem:[%s0 + $0x378] sm:$0xff]
  %v235 = vld [vmem:[%s0 + $0x380] sm:$0xff]
  %v236 = vld [vmem:[%s0 + $0x388] sm:$0xff]
  %v237 = vld [vmem:[%s0 + $0x390] sm:$0xff]
  %v238 = vld [vmem:[%s0 + $0x398] sm:$0xff]
  %v239 = vld [vmem:[%s0 + $0x3a0] sm:$0xff]
  %v240 = vld [vmem:[%s0 + $0x3a8] sm:$0xff]
  %v241 = vld [vmem:[%s0 + $0x3b0] sm:$0xff]
  %v242 = vld [vmem:[%s0 + $0x3b8] sm:$0xff]
  %v243 = vld [vmem:[%s0 + $0x3c0] sm:$0xff]
  %v244 = vld [vmem:[%s0 + $0x3c8] sm:$0xff]
  %v245 = vld [vmem:[%s0 + $0x3d0] sm:$0xff]
  %v246 = vld [vmem:[%s0 + $0x3d8] sm:$0xff]
  %v247 = vld [vmem:[%s0 + $0x3e0] sm:$0xff]
  %v248 = vld [vmem:[%s0 + $0x3e8] sm:$0xff]
  %v249 = vld [vmem:[%s0 + $0x3f0] sm:$0xff]
  %v250 = vld [vmem:[%s0 + $0x3f8] sm:$0xff]
  %v251 = vld [vmem:[%s0 + $0x400] sm:$0xff]
  %v252 = vld [vmem:[%s0 + $0x408] sm:$0xff]
  %v253 = vld [vmem:[%s0 + $0x410] sm:$0xff]
  %v254 = vld [vmem:[%s0 + $0x418] sm:$0xff]
  %v255 = vld [vmem:[%s0 + $0x420] sm:$0xff]
  %v256 = vld [vmem:[%s0 + $0x428] sm:$0xff]
  %v257 = vld [vmem:[%s0 + $0x430] sm:$0xff]
  %v258 = vld [vmem:[%s0 + $0x438] sm:$0xff]
  %v259 = vld [vmem:[%s0 + $0x440] sm:$0xff]
  %v260 = vld [vmem:[%s0 + $0x448] sm:$0xff]
  %v261 = vld [vmem:[%s0 + $0x450] sm:$0xff]
  %v262 = vld [vmem:[%s0 + $0x458] sm:$0xff]
  %v263 = vld [vmem:[%s0 + $0x460] sm:$0xff]
  %v264 = vld [vmem:[%s0 + $0x468] sm:$0xff]
  %v265 = vld [vmem:[%s0 + $0x470] sm:$0xff]
  %v266 = vld [vmem:[%s0 + $0x478] sm:$0xff]
  %v267 = vld [vmem:[%s0 + $0x480] sm:$0xff]
  %v268 = vld [vmem:[%s0 + $0x488] sm:$0xff]
  %v269 = vld [vmem:[%s0 + $0x490] sm:$0xff]
  %v270 = vld [vmem:[%s0 + $0x498] sm:$0xff]
  %v271 = vld [vmem:[%s0 + $0x4a0] sm:$0xff]
  %v272 = vld [vmem:[%s0 + $0x4a8] sm:$0xff]
  %v273 = vld [vmem:[%s0 + $0x4b0] sm:$0xff]
  %v274 = vld [vmem:[%s0 + $0x4b8] sm:$0xff]
  %v275 = vld [vmem:[%s0 + $0x4c0] sm:$0xff]
  %v276 = vld [vmem:[%s0 + $0x4c8] sm:$0xff]
  %v277 = vld [vmem:[%s0 + $0x4d0] sm:$0xff]
  %v278 = vld [vmem:[%s0 + $0x4d8] sm:$0xff]
  %v279 = vld [vmem:[%s0 + $0x4e0] sm:$0xff]
  %v280 = vld [vmem:[%s0 + $0x4e8] sm:$0xff]
  %v281 = vld [vmem:[%s0 + $0x4f0] sm:$0xff]
  %v282 = vld [vmem:[%s0 + $0x4f8] sm:$0xff]
  %v283 = vld [vmem:[%s0 + $0x500] sm:$0xff]
  %v284 = vld [vmem:[%s0 + $0x508] sm:$0xff]
  %v285 = vld [vmem:[%s0 + $0x510] sm:$0xff]
  %v286 = vld [vmem:[%s0 + $0x518] sm:$0xff]
  %v287 = vld [vmem:[%s0 + $0x520] sm:$0xff]
  %v288 = vld [vmem:[%s0 + $0x528] sm:$0xff]
  %v289 = vld [vmem:[%s0 + $0x530] sm:$0xff]
  %v290 = vld [vmem:[%s0 + $0x538] sm:$0xff]
  %v291 = vld [vmem:[%s0 + $0x540] sm:$0xff]
  %v292 = vld [vmem:[%s0 + $0x548] sm:$0xff]
  %v293 = vld [vmem:[%s0 + $0x550] sm:$0xff]
  %v294 = vld [vmem:[%s0 + $0x558] sm:$0xff]
  %v295 = vld [vmem:[%s0 + $0x560] sm:$0xff]
  %v296 = vld [vmem:[%s0 + $0x568] sm:$0xff]
  %v297 = vld [vmem:[%s0 + $0x570] sm:$0xff]
  %v298 = vld [vmem:[%s0 + $0x578] sm:$0xff]
  %v299 = vld [vmem:[%s0 + $0x580] sm:$0xff]
  %v300 = vld [vmem:[%s0 + $0x588] sm:$0xff]
  %v301 = vld [vmem:[%s0 + $0x590] sm:$0xff]
  %v302 = vld [vmem:[%s0 + $0x598] sm:$0xff]
  %v303 = vld [vmem:[%s0 + $0x5a0] sm:$0xff]
  %v304 = vld [vmem:[%s0 + $0x5a8] sm:$0xff]
  %v305 = vld [vmem:[%s0 + $0x5b0] sm:$0xff]
  %v306 = vld [vmem:[%s0 + $0x5b8] sm:$0xff]
  %v307 = vld [vmem:[%s0 + $0x5c0] sm:$0xff]
  %v308 = vld [vmem:[%s0 + $0x5c8] sm:$0xff]
  %v309 = vld [vmem:[%s0 + $0x5d0] sm:$0xff]
  %v310 = vld [vmem:[%s0 + $0x5d8] sm:$0xff]
  %v311 = vld [vmem:[%s0 + $0x5e0] sm:$0xff]
  %v312 = vld [vmem:[%s0 + $0x5e8] sm:$0xff]
  %v313 = vld [vmem:[%s0 + $0x5f0] sm:$0xff]
  %v314 = vld [vmem:[%s0 + $0x5f8] sm:$0xff]
  %v315 = vld [vmem:[%s0 + $0x600] sm:$0xff]
  %v316 = vld [vmem:[%s0 + $0x608] sm:$0xff]
  %v317 = vld [vmem:[%s0 + $0x610] sm:$0xff]
  %v318 = vld [vmem:[%s0 + $0x618] sm:$0xff]
  %v319 = vld [vmem:[%s0 + $0x620] sm:$0xff]
  %v320 = vld [vmem:[%s0 + $0x628] sm:$0xff]
  %v321 = vld [vmem:[%s0 + $0x630] sm:$0xff]
  %v322 = vld [vmem:[%s0 + $0x638] sm:$0xff]
  %v323 = vld [vmem:[%s0 + $0x640] sm:$0xff]
  %v324 = vld [vmem:[%s0 + $0x648] sm:$0xff]
  %v325 = vld [vmem:[%s0 + $0x650] sm:$0xff]
  %v326 = vld [vmem:[%s0 + $0x658] sm:$0xff]
  %v327 = vld [vmem:[%s0 + $0x660] sm:$0xff]
  %v328 = vld [vmem:[%s0 + $0x668] sm:$0xff]
  %v329 = vld [vmem:[%s0 + $0x670] sm:$0xff]
  %v330 = vld [vmem:[%s0 + $0x678] sm:$0xff]
  %v331 = vld [vmem:[%s0 + $0x680] sm:$0xff]
  %v332 = vld [vmem:[%s0 + $0x688] sm:$0xff]
  %v333 = vld [vmem:[%s0 + $0x690] sm:$0xff]
  %v334 = vld [vmem:[%s0 + $0x698] sm:$0xff]
  %v335 = vld [vmem:[%s0 + $0x6a0] sm:$0xff]
  %v336 = vld [vmem:[%s0 + $0x6a8] sm:$0xff]
  %v337 = vld [vmem:[%s0 + $0x6b0] sm:$0xff]
  %v338 = vld [vmem:[%s0 + $0x6b8] sm:$0xff]
  %340 = vset.pattern.permute.xlu0 0
  %341 = vperm.xlu0 %340, %v15
  %v342 = vpop.permute.xlu0 %341
  %345 = vset.pattern.permute.xlu0 0
  %346 = vperm.xlu0 %345, %v16
  %v347 = vpop.permute.xlu0 %346
  %350 = vset.pattern.permute.xlu0 0
  %351 = vperm.xlu0 %350, %v17
  %v352 = vpop.permute.xlu0 %351
  %355 = vset.pattern.permute.xlu0 0
  %356 = vperm.xlu0 %355, %v18
  %v357 = vpop.permute.xlu0 %356
  %360 = vset.pattern.permute.xlu0 0
  %361 = vperm.xlu0 %360, %v19
  %v362 = vpop.permute.xlu0 %361
  %365 = vset.pattern.permute.xlu0 0
  %366 = vperm.xlu0 %365, %v20
  %v367 = vpop.permute.xlu0 %366
  %370 = vset.pattern.permute.xlu0 0
  %371 = vperm.xlu0 %370, %v21
  %v372 = vpop.permute.xlu0 %371
  %375 = vset.pattern.permute.xlu0 0
  %376 = vperm.xlu0 %375, %v22
  %v377 = vpop.permute.xlu0 %376
  %380 = vset.pattern.permute.xlu0 0
  %381 = vperm.xlu0 %380, %v23
  %v382 = vpop.permute.xlu0 %381
  %385 = vset.pattern.permute.xlu0 0
  %386 = vperm.xlu0 %385, %v24
  %v387 = vpop.permute.xlu0 %386
  %390 = vset.pattern.permute.xlu0 0
  %391 = vperm.xlu0 %390, %v25
  %v392 = vpop.permute.xlu0 %391
  %395 = vset.pattern.permute.xlu0 0
  %396 = vperm.xlu0 %395, %v26
  %v397 = vpop.permute.xlu0 %396
  %400 = vset.pattern.permute.xlu0 0
  %401 = vperm.xlu0 %400, %v27
  %v402 = vpop.permute.xlu0 %401
  %405 = vset.pattern.permute.xlu0 0
  %406 = vperm.xlu0 %405, %v28
  %v407 = vpop.permute.xlu0 %406
  %410 = vset.pattern.permute.xlu0 0
  %411 = vperm.xlu0 %410, %v29
  %v412 = vpop.permute.xlu0 %411
  %415 = vset.pattern.permute.xlu0 0
  %416 = vperm.xlu0 %415, %v30
  %v417 = vpop.permute.xlu0 %416
  %420 = vset.pattern.permute.xlu0 0
  %421 = vperm.xlu0 %420, %v31
  %v422 = vpop.permute.xlu0 %421
  %425 = vset.pattern.permute.xlu0 0
  %426 = vperm.xlu0 %425, %v32
  %v427 = vpop.permute.xlu0 %426
  %430 = vset.pattern.permute.xlu0 0
  %431 = vperm.xlu0 %430, %v33
  %v432 = vpop.permute.xlu0 %431
  %435 = vset.pattern.permute.xlu0 0
  %436 = vperm.xlu0 %435, %v34
  %v437 = vpop.permute.xlu0 %436
  %440 = vset.pattern.permute.xlu0 0
  %441 = vperm.xlu0 %440, %v35
  %v442 = vpop.permute.xlu0 %441
  %445 = vset.pattern.permute.xlu0 0
  %446 = vperm.xlu0 %445, %v36
  %v447 = vpop.permute.xlu0 %446
  %450 = vset.pattern.permute.xlu0 0
  %451 = vperm.xlu0 %450, %v37
  %v452 = vpop.permute.xlu0 %451
  %455 = vset.pattern.permute.xlu0 0
  %456 = vperm.xlu0 %455, %v38
  %v457 = vpop.permute.xlu0 %456
  %460 = vset.pattern.permute.xlu0 0
  %461 = vperm.xlu0 %460, %v39
  %v462 = vpop.permute.xlu0 %461
  %465 = vset.pattern.permute.xlu0 0
  %466 = vperm.xlu0 %465, %v40
  %v467 = vpop.permute.xlu0 %466
  %470 = vset.pattern.permute.xlu0 0
  %471 = vperm.xlu0 %470, %v41
  %v472 = vpop.permute.xlu0 %471
  %475 = vset.pattern.permute.xlu0 0
  %476 = vperm.xlu0 %475, %v42
  %v477 = vpop.permute.xlu0 %476
  %480 = vset.pattern.permute.xlu0 0
  %481 = vperm.xlu0 %480, %v43
  %v482 = vpop.permute.xlu0 %481
  %485 = vset.pattern.permute.xlu0 0
  %486 = vperm.xlu0 %485, %v44
  %v487 = vpop.permute.xlu0 %486
  %490 = vset.pattern.permute.xlu0 0
  %491 = vperm.xlu0 %490, %v45
  %v492 = vpop.permute.xlu0 %491
  %495 = vset.pattern.permute.xlu0 0
  %496 = vperm.xlu0 %495, %v46
  %v497 = vpop.permute.xlu0 %496
  %500 = vset.pattern.permute.xlu0 0
  %501 = vperm.xlu0 %500, %v47
  %v502 = vpop.permute.xlu0 %501
  %505 = vset.pattern.permute.xlu0 0
  %506 = vperm.xlu0 %505, %v48
  %v507 = vpop.permute.xlu0 %506
  %510 = vset.pattern.permute.xlu0 0
  %511 = vperm.xlu0 %510, %v49
  %v512 = vpop.permute.xlu0 %511
  %515 = vset.pattern.permute.xlu0 0
  %516 = vperm.xlu0 %515, %v50
  %v517 = vpop.permute.xlu0 %516
  %520 = vset.pattern.permute.xlu0 0
  %521 = vperm.xlu0 %520, %v51
  %v522 = vpop.permute.xlu0 %521
  %525 = vset.pattern.permute.xlu0 0
  %526 = vperm.xlu0 %525, %v52
  %v527 = vpop.permute.xlu0 %526
  %530 = vset.pattern.permute.xlu0 0
  %531 = vperm.xlu0 %530, %v53
  %v532 = vpop.permute.xlu0 %531
  %535 = vset.pattern.permute.xlu0 0
  %536 = vperm.xlu0 %535, %v54
  %v537 = vpop.permute.xlu0 %536
  %540 = vset.pattern.permute.xlu0 0
  %541 = vperm.xlu0 %540, %v55
  %v542 = vpop.permute.xlu0 %541
  %545 = vset.pattern.permute.xlu0 0
  %546 = vperm.xlu0 %545, %v56
  %v547 = vpop.permute.xlu0 %546
  %550 = vset.pattern.permute.xlu0 0
  %551 = vperm.xlu0 %550, %v57
  %v552 = vpop.permute.xlu0 %551
  %555 = vset.pattern.permute.xlu0 0
  %556 = vperm.xlu0 %555, %v58
  %v557 = vpop.permute.xlu0 %556
  %560 = vset.pattern.permute.xlu0 0
  %561 = vperm.xlu0 %560, %v59
  %v562 = vpop.permute.xlu0 %561
  %565 = vset.pattern.permute.xlu0 0
  %566 = vperm.xlu0 %565, %v60
  %v567 = vpop.permute.xlu0 %566
  %570 = vset.pattern.permute.xlu0 0
  %571 = vperm.xlu0 %570, %v61
  %v572 = vpop.permute.xlu0 %571
  %575 = vset.pattern.permute.xlu0 0
  %576 = vperm.xlu0 %575, %v62
  %v577 = vpop.permute.xlu0 %576
  %580 = vset.pattern.permute.xlu0 0
  %581 = vperm.xlu0 %580, %v63
  %v582 = vpop.permute.xlu0 %581
  %585 = vset.pattern.permute.xlu0 0
  %586 = vperm.xlu0 %585, %v64
  %v587 = vpop.permute.xlu0 %586
  %590 = vset.pattern.permute.xlu0 0
  %591 = vperm.xlu0 %590, %v65
  %v592 = vpop.permute.xlu0 %591
  %595 = vset.pattern.permute.xlu0 0
  %596 = vperm.xlu0 %595, %v66
  %v597 = vpop.permute.xlu0 %596
  %600 = vset.pattern.permute.xlu0 0
  %601 = vperm.xlu0 %600, %v67
  %v602 = vpop.permute.xlu0 %601
  %605 = vset.pattern.permute.xlu0 0
  %606 = vperm.xlu0 %605, %v68
  %v607 = vpop.permute.xlu0 %606
  %610 = vset.pattern.permute.xlu0 0
  %611 = vperm.xlu0 %610, %v69
  %v612 = vpop.permute.xlu0 %611
  %615 = vset.pattern.permute.xlu0 0
  %616 = vperm.xlu0 %615, %v70
  %v617 = vpop.permute.xlu0 %616
  %620 = vset.pattern.permute.xlu0 0
  %621 = vperm.xlu0 %620, %v71
  %v622 = vpop.permute.xlu0 %621
  %625 = vset.pattern.permute.xlu0 0
  %626 = vperm.xlu0 %625, %v72
  %v627 = vpop.permute.xlu0 %626
  %630 = vset.pattern.permute.xlu0 0
  %631 = vperm.xlu0 %630, %v73
  %v632 = vpop.permute.xlu0 %631
  %635 = vset.pattern.permute.xlu0 0
  %636 = vperm.xlu0 %635, %v74
  %v637 = vpop.permute.xlu0 %636
  %640 = vset.pattern.permute.xlu0 0
  %641 = vperm.xlu0 %640, %v75
  %v642 = vpop.permute.xlu0 %641
  %645 = vset.pattern.permute.xlu0 0
  %646 = vperm.xlu0 %645, %v76
  %v647 = vpop.permute.xlu0 %646
  %650 = vset.pattern.permute.xlu0 0
  %651 = vperm.xlu0 %650, %v77
  %v652 = vpop.permute.xlu0 %651
  %655 = vset.pattern.permute.xlu0 0
  %656 = vperm.xlu0 %655, %v78
  %v657 = vpop.permute.xlu0 %656
  %660 = vset.pattern.permute.xlu0 0
  %661 = vperm.xlu0 %660, %v79
  %v662 = vpop.permute.xlu0 %661
  %665 = vset.pattern.permute.xlu0 0
  %666 = vperm.xlu0 %665, %v80
  %v667 = vpop.permute.xlu0 %666
  %670 = vset.pattern.permute.xlu0 0
  %671 = vperm.xlu0 %670, %v81
  %v672 = vpop.permute.xlu0 %671
  %675 = vset.pattern.permute.xlu0 0
  %676 = vperm.xlu0 %675, %v82
  %v677 = vpop.permute.xlu0 %676
  %680 = vset.pattern.permute.xlu0 0
  %681 = vperm.xlu0 %680, %v83
  %v682 = vpop.permute.xlu0 %681
  %685 = vset.pattern.permute.xlu0 0
  %686 = vperm.xlu0 %685, %v84
  %v687 = vpop.permute.xlu0 %686
  %690 = vset.pattern.permute.xlu0 0
  %691 = vperm.xlu0 %690, %v85
  %v692 = vpop.permute.xlu0 %691
  %695 = vset.pattern.permute.xlu0 0
  %696 = vperm.xlu0 %695, %v86
  %v697 = vpop.permute.xlu0 %696
  %700 = vset.pattern.permute.xlu0 0
  %701 = vperm.xlu0 %700, %v87
  %v702 = vpop.permute.xlu0 %701
  %705 = vset.pattern.permute.xlu0 0
  %706 = vperm.xlu0 %705, %v88
  %v707 = vpop.permute.xlu0 %706
  %710 = vset.pattern.permute.xlu0 0
  %711 = vperm.xlu0 %710, %v89
  %v712 = vpop.permute.xlu0 %711
  %715 = vset.pattern.permute.xlu0 0
  %716 = vperm.xlu0 %715, %v90
  %v717 = vpop.permute.xlu0 %716
  %720 = vset.pattern.permute.xlu0 0
  %721 = vperm.xlu0 %720, %v91
  %v722 = vpop.permute.xlu0 %721
  %725 = vset.pattern.permute.xlu0 0
  %726 = vperm.xlu0 %725, %v92
  %v727 = vpop.permute.xlu0 %726
  %730 = vset.pattern.permute.xlu0 0
  %731 = vperm.xlu0 %730, %v93
  %v732 = vpop.permute.xlu0 %731
  %735 = vset.pattern.permute.xlu0 0
  %736 = vperm.xlu0 %735, %v94
  %v737 = vpop.permute.xlu0 %736
  %740 = vset.pattern.permute.xlu0 0
  %741 = vperm.xlu0 %740, %v95
  %v742 = vpop.permute.xlu0 %741
  %745 = vset.pattern.permute.xlu0 0
  %746 = vperm.xlu0 %745, %v96
  %v747 = vpop.permute.xlu0 %746
  %750 = vset.pattern.permute.xlu0 0
  %751 = vperm.xlu0 %750, %v97
  %v752 = vpop.permute.xlu0 %751
  %755 = vset.pattern.permute.xlu0 0
  %756 = vperm.xlu0 %755, %v98
  %v757 = vpop.permute.xlu0 %756
  %760 = vset.pattern.permute.xlu0 0
  %761 = vperm.xlu0 %760, %v99
  %v762 = vpop.permute.xlu0 %761
  %765 = vset.pattern.permute.xlu0 0
  %766 = vperm.xlu0 %765, %v100
  %v767 = vpop.permute.xlu0 %766
  %770 = vset.pattern.permute.xlu0 0
  %771 = vperm.xlu0 %770, %v101
  %v772 = vpop.permute.xlu0 %771
  %775 = vset.pattern.permute.xlu0 0
  %776 = vperm.xlu0 %775, %v102
  %v777 = vpop.permute.xlu0 %776
  %780 = vset.pattern.permute.xlu0 0
  %781 = vperm.xlu0 %780, %v103
  %v782 = vpop.permute.xlu0 %781
  %785 = vset.pattern.permute.xlu0 0
  %786 = vperm.xlu0 %785, %v104
  %v787 = vpop.permute.xlu0 %786
  %790 = vset.pattern.permute.xlu0 0
  %791 = vperm.xlu0 %790, %v105
  %v792 = vpop.permute.xlu0 %791
  %795 = vset.pattern.permute.xlu0 0
  %796 = vperm.xlu0 %795, %v106
  %v797 = vpop.permute.xlu0 %796
  %800 = vset.pattern.permute.xlu0 0
  %801 = vperm.xlu0 %800, %v107
  %v802 = vpop.permute.xlu0 %801
  %805 = vset.pattern.permute.xlu0 0
  %806 = vperm.xlu0 %805, %v108
  %v807 = vpop.permute.xlu0 %806
  %810 = vset.pattern.permute.xlu0 0
  %811 = vperm.xlu0 %810, %v109
  %v812 = vpop.permute.xlu0 %811
  %815 = vset.pattern.permute.xlu0 0
  %816 = vperm.xlu0 %815, %v110
  %v817 = vpop.permute.xlu0 %816
  %820 = vset.pattern.permute.xlu0 0
  %821 = vperm.xlu0 %820, %v111
  %v822 = vpop.permute.xlu0 %821
  %825 = vset.pattern.permute.xlu0 0
  %826 = vperm.xlu0 %825, %v112
  %v827 = vpop.permute.xlu0 %826
  %830 = vset.pattern.permute.xlu0 0
  %831 = vperm.xlu0 %830, %v113
  %v832 = vpop.permute.xlu0 %831
  %835 = vset.pattern.permute.xlu0 0
  %836 = vperm.xlu0 %835, %v114
  %v837 = vpop.permute.xlu0 %836
  %840 = vset.pattern.permute.xlu0 0
  %841 = vperm.xlu0 %840, %v115
  %v842 = vpop.permute.xlu0 %841
  %845 = vset.pattern.permute.xlu0 0
  %846 = vperm.xlu0 %845, %v116
  %v847 = vpop.permute.xlu0 %846
  %850 = vset.pattern.permute.xlu0 0
  %851 = vperm.xlu0 %850, %v117
  %v852 = vpop.permute.xlu0 %851
  %855 = vset.pattern.permute.xlu0 0
  %856 = vperm.xlu0 %855, %v118
  %v857 = vpop.permute.xlu0 %856
  %860 = vset.pattern.permute.xlu0 0
  %861 = vperm.xlu0 %860, %v119
  %v862 = vpop.permute.xlu0 %861
  %865 = vset.pattern.permute.xlu0 0
  %866 = vperm.xlu0 %865, %v120
  %v867 = vpop.permute.xlu0 %866
  %870 = vset.pattern.permute.xlu0 0
  %871 = vperm.xlu0 %870, %v121
  %v872 = vpop.permute.xlu0 %871
  %875 = vset.pattern.permute.xlu0 0
  %876 = vperm.xlu0 %875, %v122
  %v877 = vpop.permute.xlu0 %876
  %v879 = vmul.f32 %v123, %v342
  %v880 = vmul.f32 %v124, %v342
  %v881 = vmul.f32 %v125, %v347
  %v882 = vmul.f32 %v126, %v347
  %v883 = vmul.f32 %v127, %v352
  %v884 = vmul.f32 %v128, %v352
  %v885 = vmul.f32 %v129, %v357
  %v886 = vmul.f32 %v130, %v357
  %v887 = vmul.f32 %v131, %v362
  %v888 = vmul.f32 %v132, %v362
  %v889 = vmul.f32 %v133, %v367
  %v890 = vmul.f32 %v134, %v367
  %v891 = vmul.f32 %v135, %v372
  %v892 = vmul.f32 %v136, %v372
  %v893 = vmul.f32 %v137, %v377
  %v894 = vmul.f32 %v138, %v377
  %v895 = vmul.f32 %v139, %v382
  %v896 = vmul.f32 %v140, %v382
  %v897 = vmul.f32 %v141, %v387
  %v898 = vmul.f32 %v142, %v387
  %v899 = vmul.f32 %v143, %v392
  %v900 = vmul.f32 %v144, %v392
  %v901 = vmul.f32 %v145, %v397
  %v902 = vmul.f32 %v146, %v397
  %v903 = vmul.f32 %v147, %v402
  %v904 = vmul.f32 %v148, %v402
  %v905 = vmul.f32 %v149, %v407
  %v906 = vmul.f32 %v150, %v407
  %v907 = vmul.f32 %v151, %v412
  %v908 = vmul.f32 %v152, %v412
  %v909 = vmul.f32 %v153, %v417
  %v910 = vmul.f32 %v154, %v417
  %v911 = vmul.f32 %v155, %v422
  %v912 = vmul.f32 %v156, %v422
  %v913 = vmul.f32 %v157, %v427
  %v914 = vmul.f32 %v158, %v427
  %v915 = vmul.f32 %v159, %v432
  %v916 = vmul.f32 %v160, %v432
  %v917 = vmul.f32 %v161, %v437
  %v918 = vmul.f32 %v162, %v437
  %v919 = vmul.f32 %v163, %v442
  %v920 = vmul.f32 %v164, %v442
  %v921 = vmul.f32 %v165, %v447
  %v922 = vmul.f32 %v166, %v447
  %v923 = vmul.f32 %v167, %v452
  %v924 = vmul.f32 %v168, %v452
  %v925 = vmul.f32 %v169, %v457
  %v926 = vmul.f32 %v170, %v457
  %v927 = vmul.f32 %v171, %v462
  %v928 = vmul.f32 %v172, %v462
  %v929 = vmul.f32 %v173, %v467
  %v930 = vmul.f32 %v174, %v467
  %v931 = vmul.f32 %v175, %v472
  %v932 = vmul.f32 %v176, %v472
  %v933 = vmul.f32 %v177, %v477
  %v934 = vmul.f32 %v178, %v477
  %v935 = vmul.f32 %v179, %v482
  %v936 = vmul.f32 %v180, %v482
  %v937 = vmul.f32 %v181, %v487
  %v938 = vmul.f32 %v182, %v487
  %v939 = vmul.f32 %v183, %v492
  %v940 = vmul.f32 %v184, %v492
  %v941 = vmul.f32 %v185, %v497
  %v942 = vmul.f32 %v186, %v497
  %v943 = vmul.f32 %v187, %v502
  %v944 = vmul.f32 %v188, %v502
  %v945 = vmul.f32 %v189, %v507
  %v946 = vmul.f32 %v190, %v507
  %v947 = vmul.f32 %v191, %v512
  %v948 = vmul.f32 %v192, %v512
  %v949 = vmul.f32 %v193, %v517
  %v950 = vmul.f32 %v194, %v517
  %v951 = vmul.f32 %v195, %v522
  %v952 = vmul.f32 %v196, %v522
  %v953 = vmul.f32 %v197, %v527
  %v954 = vmul.f32 %v198, %v527
  %v955 = vmul.f32 %v199, %v532
  %v956 = vmul.f32 %v200, %v532
  %v957 = vmul.f32 %v201, %v537
  %v958 = vmul.f32 %v202, %v537
  %v959 = vmul.f32 %v203, %v542
  %v960 = vmul.f32 %v204, %v542
  %v961 = vmul.f32 %v205, %v547
  %v962 = vmul.f32 %v206, %v547
  %v963 = vmul.f32 %v207, %v552
  %v964 = vmul.f32 %v208, %v552
  %v965 = vmul.f32 %v209, %v557
  %v966 = vmul.f32 %v210, %v557
  %v967 = vmul.f32 %v211, %v562
  %v968 = vmul.f32 %v212, %v562
  %v969 = vmul.f32 %v213, %v567
  %v970 = vmul.f32 %v214, %v567
  %v971 = vmul.f32 %v215, %v572
  %v972 = vmul.f32 %v216, %v572
  %v973 = vmul.f32 %v217, %v577
  %v974 = vmul.f32 %v218, %v577
  %v975 = vmul.f32 %v219, %v582
  %v976 = vmul.f32 %v220, %v582
  %v977 = vmul.f32 %v221, %v587
  %v978 = vmul.f32 %v222, %v587
  %v979 = vmul.f32 %v223, %v592
  %v980 = vmul.f32 %v224, %v592
  %v981 = vmul.f32 %v225, %v597
  %v982 = vmul.f32 %v226, %v597
  %v983 = vmul.f32 %v227, %v602
  %v984 = vmul.f32 %v228, %v602
  %v985 = vmul.f32 %v229, %v607
  %v986 = vmul.f32 %v230, %v607
  %v987 = vmul.f32 %v231, %v612
  %v988 = vmul.f32 %v232, %v612
  %v989 = vmul.f32 %v233, %v617
  %v990 = vmul.f32 %v234, %v617
  %v991 = vmul.f32 %v235, %v622
  %v992 = vmul.f32 %v236, %v622
  %v993 = vmul.f32 %v237, %v627
  %v994 = vmul.f32 %v238, %v627
  %v995 = vmul.f32 %v239, %v632
  %v996 = vmul.f32 %v240, %v632
  %v997 = vmul.f32 %v241, %v637
  %v998 = vmul.f32 %v242, %v637
  %v999 = vmul.f32 %v243, %v642
  %v1000 = vmul.f32 %v244, %v642
  %v1001 = vmul.f32 %v245, %v647
  %v1002 = vmul.f32 %v246, %v647
  %v1003 = vmul.f32 %v247, %v652
  %v1004 = vmul.f32 %v248, %v652
  %v1005 = vmul.f32 %v249, %v657
  %v1006 = vmul.f32 %v250, %v657
  %v1007 = vmul.f32 %v251, %v662
  %v1008 = vmul.f32 %v252, %v662
  %v1009 = vmul.f32 %v253, %v667
  %v1010 = vmul.f32 %v254, %v667
  %v1011 = vmul.f32 %v255, %v672
  %v1012 = vmul.f32 %v256, %v672
  %v1013 = vmul.f32 %v257, %v677
  %v1014 = vmul.f32 %v258, %v677
  %v1015 = vmul.f32 %v259, %v682
  %v1016 = vmul.f32 %v260, %v682
  %v1017 = vmul.f32 %v261, %v687
  %v1018 = vmul.f32 %v262, %v687
  %v1019 = vmul.f32 %v263, %v692
  %v1020 = vmul.f32 %v264, %v692
  %v1021 = vmul.f32 %v265, %v697
  %v1022 = vmul.f32 %v266, %v697
  %v1023 = vmul.f32 %v267, %v702
  %v1024 = vmul.f32 %v268, %v702
  %v1025 = vmul.f32 %v269, %v707
  %v1026 = vmul.f32 %v270, %v707
  %v1027 = vmul.f32 %v271, %v712
  %v1028 = vmul.f32 %v272, %v712
  %v1029 = vmul.f32 %v273, %v717
  %v1030 = vmul.f32 %v274, %v717
  %v1031 = vmul.f32 %v275, %v722
  %v1032 = vmul.f32 %v276, %v722
  %v1033 = vmul.f32 %v277, %v727
  %v1034 = vmul.f32 %v278, %v727
  %v1035 = vmul.f32 %v279, %v732
  %v1036 = vmul.f32 %v280, %v732
  %v1037 = vmul.f32 %v281, %v737
  %v1038 = vmul.f32 %v282, %v737
  %v1039 = vmul.f32 %v283, %v742
  %v1040 = vmul.f32 %v284, %v742
  %v1041 = vmul.f32 %v285, %v747
  %v1042 = vmul.f32 %v286, %v747
  %v1043 = vmul.f32 %v287, %v752
  %v1044 = vmul.f32 %v288, %v752
  %v1045 = vmul.f32 %v289, %v757
  %v1046 = vmul.f32 %v290, %v757
  %v1047 = vmul.f32 %v291, %v762
  %v1048 = vmul.f32 %v292, %v762
  %v1049 = vmul.f32 %v293, %v767
  %v1050 = vmul.f32 %v294, %v767
  %v1051 = vmul.f32 %v295, %v772
  %v1052 = vmul.f32 %v296, %v772
  %v1053 = vmul.f32 %v297, %v777
  %v1054 = vmul.f32 %v298, %v777
  %v1055 = vmul.f32 %v299, %v782
  %v1056 = vmul.f32 %v300, %v782
  %v1057 = vmul.f32 %v301, %v787
  %v1058 = vmul.f32 %v302, %v787
  %v1059 = vmul.f32 %v303, %v792
  %v1060 = vmul.f32 %v304, %v792
  %v1061 = vmul.f32 %v305, %v797
  %v1062 = vmul.f32 %v306, %v797
  %v1063 = vmul.f32 %v307, %v802
  %v1064 = vmul.f32 %v308, %v802
  %v1065 = vmul.f32 %v309, %v807
  %v1066 = vmul.f32 %v310, %v807
  %v1067 = vmul.f32 %v311, %v812
  %v1068 = vmul.f32 %v312, %v812
  %v1069 = vmul.f32 %v313, %v817
  %v1070 = vmul.f32 %v314, %v817
  %v1071 = vmul.f32 %v315, %v822
  %v1072 = vmul.f32 %v316, %v822
  %v1073 = vmul.f32 %v317, %v827
  %v1074 = vmul.f32 %v318, %v827
  %v1075 = vmul.f32 %v319, %v832
  %v1076 = vmul.f32 %v320, %v832
  %v1077 = vmul.f32 %v321, %v837
  %v1078 = vmul.f32 %v322, %v837
  %v1079 = vmul.f32 %v323, %v842
  %v1080 = vmul.f32 %v324, %v842
  %v1081 = vmul.f32 %v325, %v847
  %v1082 = vmul.f32 %v326, %v847
  %v1083 = vmul.f32 %v327, %v852
  %v1084 = vmul.f32 %v328, %v852
  %v1085 = vmul.f32 %v329, %v857
  %v1086 = vmul.f32 %v330, %v857
  %v1087 = vmul.f32 %v331, %v862
  %v1088 = vmul.f32 %v332, %v862
  %v1089 = vmul.f32 %v333, %v867
  %v1090 = vmul.f32 %v334, %v867
  %v1091 = vmul.f32 %v335, %v872
  %v1092 = vmul.f32 %v336, %v872
  %v1093 = vmul.f32 %v337, %v877
  %v1094 = vmul.f32 %v338, %v877
  %1095 = vset.pattern.permute.xlu0 1
  %1096 = vperm.xlu0 %1095, %v15
  %v1097 = vpop.permute.xlu0 %1096
  %1099 = vset.pattern.permute.xlu0 1
  %1100 = vperm.xlu0 %1099, %v16
  %v1101 = vpop.permute.xlu0 %1100
  %1103 = vset.pattern.permute.xlu0 1
  %1104 = vperm.xlu0 %1103, %v17
  %v1105 = vpop.permute.xlu0 %1104
  %1107 = vset.pattern.permute.xlu0 1
  %1108 = vperm.xlu0 %1107, %v18
  %v1109 = vpop.permute.xlu0 %1108
  %1111 = vset.pattern.permute.xlu0 1
  %1112 = vperm.xlu0 %1111, %v19
  %v1113 = vpop.permute.xlu0 %1112
  %1115 = vset.pattern.permute.xlu0 1
  %1116 = vperm.xlu0 %1115, %v20
  %v1117 = vpop.permute.xlu0 %1116
  %1119 = vset.pattern.permute.xlu0 1
  %1120 = vperm.xlu0 %1119, %v21
  %v1121 = vpop.permute.xlu0 %1120
  %1123 = vset.pattern.permute.xlu0 1
  %1124 = vperm.xlu0 %1123, %v22
  %v1125 = vpop.permute.xlu0 %1124
  %1127 = vset.pattern.permute.xlu0 1
  %1128 = vperm.xlu0 %1127, %v23
  %v1129 = vpop.permute.xlu0 %1128
  %1131 = vset.pattern.permute.xlu0 1
  %1132 = vperm.xlu0 %1131, %v24
  %v1133 = vpop.permute.xlu0 %1132
  %1135 = vset.pattern.permute.xlu0 1
  %1136 = vperm.xlu0 %1135, %v25
  %v1137 = vpop.permute.xlu0 %1136
  %1139 = vset.pattern.permute.xlu0 1
  %1140 = vperm.xlu0 %1139, %v26
  %v1141 = vpop.permute.xlu0 %1140
  %1143 = vset.pattern.permute.xlu0 1
  %1144 = vperm.xlu0 %1143, %v27
  %v1145 = vpop.permute.xlu0 %1144
  %1147 = vset.pattern.permute.xlu0 1
  %1148 = vperm.xlu0 %1147, %v28
  %v1149 = vpop.permute.xlu0 %1148
  %1151 = vset.pattern.permute.xlu0 1
  %1152 = vperm.xlu0 %1151, %v29
  %v1153 = vpop.permute.xlu0 %1152
  %1155 = vset.pattern.permute.xlu0 1
  %1156 = vperm.xlu0 %1155, %v30
  %v1157 = vpop.permute.xlu0 %1156
  %1159 = vset.pattern.permute.xlu0 1
  %1160 = vperm.xlu0 %1159, %v31
  %v1161 = vpop.permute.xlu0 %1160
  %1163 = vset.pattern.permute.xlu0 1
  %1164 = vperm.xlu0 %1163, %v32
  %v1165 = vpop.permute.xlu0 %1164
  %1167 = vset.pattern.permute.xlu0 1
  %1168 = vperm.xlu0 %1167, %v33
  %v1169 = vpop.permute.xlu0 %1168
  %1171 = vset.pattern.permute.xlu0 1
  %1172 = vperm.xlu0 %1171, %v34
  %v1173 = vpop.permute.xlu0 %1172
  %1175 = vset.pattern.permute.xlu0 1
  %1176 = vperm.xlu0 %1175, %v35
  %v1177 = vpop.permute.xlu0 %1176
  %1179 = vset.pattern.permute.xlu0 1
  %1180 = vperm.xlu0 %1179, %v36
  %v1181 = vpop.permute.xlu0 %1180
  %1183 = vset.pattern.permute.xlu0 1
  %1184 = vperm.xlu0 %1183, %v37
  %v1185 = vpop.permute.xlu0 %1184
  %1187 = vset.pattern.permute.xlu0 1
  %1188 = vperm.xlu0 %1187, %v38
  %v1189 = vpop.permute.xlu0 %1188
  %1191 = vset.pattern.permute.xlu0 1
  %1192 = vperm.xlu0 %1191, %v39
  %v1193 = vpop.permute.xlu0 %1192
  %1195 = vset.pattern.permute.xlu0 1
  %1196 = vperm.xlu0 %1195, %v40
  %v1197 = vpop.permute.xlu0 %1196
  %1199 = vset.pattern.permute.xlu0 1
  %1200 = vperm.xlu0 %1199, %v41
  %v1201 = vpop.permute.xlu0 %1200
  %1203 = vset.pattern.permute.xlu0 1
  %1204 = vperm.xlu0 %1203, %v42
  %v1205 = vpop.permute.xlu0 %1204
  %1207 = vset.pattern.permute.xlu0 1
  %1208 = vperm.xlu0 %1207, %v43
  %v1209 = vpop.permute.xlu0 %1208
  %1211 = vset.pattern.permute.xlu0 1
  %1212 = vperm.xlu0 %1211, %v44
  %v1213 = vpop.permute.xlu0 %1212
  %1215 = vset.pattern.permute.xlu0 1
  %1216 = vperm.xlu0 %1215, %v45
  %v1217 = vpop.permute.xlu0 %1216
  %1219 = vset.pattern.permute.xlu0 1
  %1220 = vperm.xlu0 %1219, %v46
  %v1221 = vpop.permute.xlu0 %1220
  %1223 = vset.pattern.permute.xlu0 1
  %1224 = vperm.xlu0 %1223, %v47
  %v1225 = vpop.permute.xlu0 %1224
  %1227 = vset.pattern.permute.xlu0 1
  %1228 = vperm.xlu0 %1227, %v48
  %v1229 = vpop.permute.xlu0 %1228
  %1231 = vset.pattern.permute.xlu0 1
  %1232 = vperm.xlu0 %1231, %v49
  %v1233 = vpop.permute.xlu0 %1232
  %1235 = vset.pattern.permute.xlu0 1
  %1236 = vperm.xlu0 %1235, %v50
  %v1237 = vpop.permute.xlu0 %1236
  %1239 = vset.pattern.permute.xlu0 1
  %1240 = vperm.xlu0 %1239, %v51
  %v1241 = vpop.permute.xlu0 %1240
  %1243 = vset.pattern.permute.xlu0 1
  %1244 = vperm.xlu0 %1243, %v52
  %v1245 = vpop.permute.xlu0 %1244
  %1247 = vset.pattern.permute.xlu0 1
  %1248 = vperm.xlu0 %1247, %v53
  %v1249 = vpop.permute.xlu0 %1248
  %1251 = vset.pattern.permute.xlu0 1
  %1252 = vperm.xlu0 %1251, %v54
  %v1253 = vpop.permute.xlu0 %1252
  %1255 = vset.pattern.permute.xlu0 1
  %1256 = vperm.xlu0 %1255, %v55
  %v1257 = vpop.permute.xlu0 %1256
  %1259 = vset.pattern.permute.xlu0 1
  %1260 = vperm.xlu0 %1259, %v56
  %v1261 = vpop.permute.xlu0 %1260
  %1263 = vset.pattern.permute.xlu0 1
  %1264 = vperm.xlu0 %1263, %v57
  %v1265 = vpop.permute.xlu0 %1264
  %1267 = vset.pattern.permute.xlu0 1
  %1268 = vperm.xlu0 %1267, %v58
  %v1269 = vpop.permute.xlu0 %1268
  %1271 = vset.pattern.permute.xlu0 1
  %1272 = vperm.xlu0 %1271, %v59
  %v1273 = vpop.permute.xlu0 %1272
  %1275 = vset.pattern.permute.xlu0 1
  %1276 = vperm.xlu0 %1275, %v60
  %v1277 = vpop.permute.xlu0 %1276
  %1279 = vset.pattern.permute.xlu0 1
  %1280 = vperm.xlu0 %1279, %v61
  %v1281 = vpop.permute.xlu0 %1280
  %1283 = vset.pattern.permute.xlu0 1
  %1284 = vperm.xlu0 %1283, %v62
  %v1285 = vpop.permute.xlu0 %1284
  %1287 = vset.pattern.permute.xlu0 1
  %1288 = vperm.xlu0 %1287, %v63
  %v1289 = vpop.permute.xlu0 %1288
  %1291 = vset.pattern.permute.xlu0 1
  %1292 = vperm.xlu0 %1291, %v64
  %v1293 = vpop.permute.xlu0 %1292
  %1295 = vset.pattern.permute.xlu0 1
  %1296 = vperm.xlu0 %1295, %v65
  %v1297 = vpop.permute.xlu0 %1296
  %1299 = vset.pattern.permute.xlu0 1
  %1300 = vperm.xlu0 %1299, %v66
  %v1301 = vpop.permute.xlu0 %1300
  %1303 = vset.pattern.permute.xlu0 1
  %1304 = vperm.xlu0 %1303, %v67
  %v1305 = vpop.permute.xlu0 %1304
  %1307 = vset.pattern.permute.xlu0 1
  %1308 = vperm.xlu0 %1307, %v68
  %v1309 = vpop.permute.xlu0 %1308
  %1311 = vset.pattern.permute.xlu0 1
  %1312 = vperm.xlu0 %1311, %v69
  %v1313 = vpop.permute.xlu0 %1312
  %1315 = vset.pattern.permute.xlu0 1
  %1316 = vperm.xlu0 %1315, %v70
  %v1317 = vpop.permute.xlu0 %1316
  %1319 = vset.pattern.permute.xlu0 1
  %1320 = vperm.xlu0 %1319, %v71
  %v1321 = vpop.permute.xlu0 %1320
  %1323 = vset.pattern.permute.xlu0 1
  %1324 = vperm.xlu0 %1323, %v72
  %v1325 = vpop.permute.xlu0 %1324
  %1327 = vset.pattern.permute.xlu0 1
  %1328 = vperm.xlu0 %1327, %v73
  %v1329 = vpop.permute.xlu0 %1328
  %1331 = vset.pattern.permute.xlu0 1
  %1332 = vperm.xlu0 %1331, %v74
  %v1333 = vpop.permute.xlu0 %1332
  %1335 = vset.pattern.permute.xlu0 1
  %1336 = vperm.xlu0 %1335, %v75
  %v1337 = vpop.permute.xlu0 %1336
  %1339 = vset.pattern.permute.xlu0 1
  %1340 = vperm.xlu0 %1339, %v76
  %v1341 = vpop.permute.xlu0 %1340
  %1343 = vset.pattern.permute.xlu0 1
  %1344 = vperm.xlu0 %1343, %v77
  %v1345 = vpop.permute.xlu0 %1344
  %1347 = vset.pattern.permute.xlu0 1
  %1348 = vperm.xlu0 %1347, %v78
  %v1349 = vpop.permute.xlu0 %1348
  %1351 = vset.pattern.permute.xlu0 1
  %1352 = vperm.xlu0 %1351, %v79
  %v1353 = vpop.permute.xlu0 %1352
  %1355 = vset.pattern.permute.xlu0 1
  %1356 = vperm.xlu0 %1355, %v80
  %v1357 = vpop.permute.xlu0 %1356
  %1359 = vset.pattern.permute.xlu0 1
  %1360 = vperm.xlu0 %1359, %v81
  %v1361 = vpop.permute.xlu0 %1360
  %1363 = vset.pattern.permute.xlu0 1
  %1364 = vperm.xlu0 %1363, %v82
  %v1365 = vpop.permute.xlu0 %1364
  %1367 = vset.pattern.permute.xlu0 1
  %1368 = vperm.xlu0 %1367, %v83
  %v1369 = vpop.permute.xlu0 %1368
  %1371 = vset.pattern.permute.xlu0 1
  %1372 = vperm.xlu0 %1371, %v84
  %v1373 = vpop.permute.xlu0 %1372
  %1375 = vset.pattern.permute.xlu0 1
  %1376 = vperm.xlu0 %1375, %v85
  %v1377 = vpop.permute.xlu0 %1376
  %1379 = vset.pattern.permute.xlu0 1
  %1380 = vperm.xlu0 %1379, %v86
  %v1381 = vpop.permute.xlu0 %1380
  %1383 = vset.pattern.permute.xlu0 1
  %1384 = vperm.xlu0 %1383, %v87
  %v1385 = vpop.permute.xlu0 %1384
  %1387 = vset.pattern.permute.xlu0 1
  %1388 = vperm.xlu0 %1387, %v88
  %v1389 = vpop.permute.xlu0 %1388
  %1391 = vset.pattern.permute.xlu0 1
  %1392 = vperm.xlu0 %1391, %v89
  %v1393 = vpop.permute.xlu0 %1392
  %1395 = vset.pattern.permute.xlu0 1
  %1396 = vperm.xlu0 %1395, %v90
  %v1397 = vpop.permute.xlu0 %1396
  %1399 = vset.pattern.permute.xlu0 1
  %1400 = vperm.xlu0 %1399, %v91
  %v1401 = vpop.permute.xlu0 %1400
  %1403 = vset.pattern.permute.xlu0 1
  %1404 = vperm.xlu0 %1403, %v92
  %v1405 = vpop.permute.xlu0 %1404
  %1407 = vset.pattern.permute.xlu0 1
  %1408 = vperm.xlu0 %1407, %v93
  %v1409 = vpop.permute.xlu0 %1408
  %1411 = vset.pattern.permute.xlu0 1
  %1412 = vperm.xlu0 %1411, %v94
  %v1413 = vpop.permute.xlu0 %1412
  %1415 = vset.pattern.permute.xlu0 1
  %1416 = vperm.xlu0 %1415, %v95
  %v1417 = vpop.permute.xlu0 %1416
  %1419 = vset.pattern.permute.xlu0 1
  %1420 = vperm.xlu0 %1419, %v96
  %v1421 = vpop.permute.xlu0 %1420
  %1423 = vset.pattern.permute.xlu0 1
  %1424 = vperm.xlu0 %1423, %v97
  %v1425 = vpop.permute.xlu0 %1424
  %1427 = vset.pattern.permute.xlu0 1
  %1428 = vperm.xlu0 %1427, %v98
  %v1429 = vpop.permute.xlu0 %1428
  %1431 = vset.pattern.permute.xlu0 1
  %1432 = vperm.xlu0 %1431, %v99
  %v1433 = vpop.permute.xlu0 %1432
  %1435 = vset.pattern.permute.xlu0 1
  %1436 = vperm.xlu0 %1435, %v100
  %v1437 = vpop.permute.xlu0 %1436
  %1439 = vset.pattern.permute.xlu0 1
  %1440 = vperm.xlu0 %1439, %v101
  %v1441 = vpop.permute.xlu0 %1440
  %1443 = vset.pattern.permute.xlu0 1
  %1444 = vperm.xlu0 %1443, %v102
  %v1445 = vpop.permute.xlu0 %1444
  %1447 = vset.pattern.permute.xlu0 1
  %1448 = vperm.xlu0 %1447, %v103
  %v1449 = vpop.permute.xlu0 %1448
  %1451 = vset.pattern.permute.xlu0 1
  %1452 = vperm.xlu0 %1451, %v104
  %v1453 = vpop.permute.xlu0 %1452
  %1455 = vset.pattern.permute.xlu0 1
  %1456 = vperm.xlu0 %1455, %v105
  %v1457 = vpop.permute.xlu0 %1456
  %1459 = vset.pattern.permute.xlu0 1
  %1460 = vperm.xlu0 %1459, %v106
  %v1461 = vpop.permute.xlu0 %1460
  %1463 = vset.pattern.permute.xlu0 1
  %1464 = vperm.xlu0 %1463, %v107
  %v1465 = vpop.permute.xlu0 %1464
  %1467 = vset.pattern.permute.xlu0 1
  %1468 = vperm.xlu0 %1467, %v108
  %v1469 = vpop.permute.xlu0 %1468
  %1471 = vset.pattern.permute.xlu0 1
  %1472 = vperm.xlu0 %1471, %v109
  %v1473 = vpop.permute.xlu0 %1472
  %1475 = vset.pattern.permute.xlu0 1
  %1476 = vperm.xlu0 %1475, %v110
  %v1477 = vpop.permute.xlu0 %1476
  %1479 = vset.pattern.permute.xlu0 1
  %1480 = vperm.xlu0 %1479, %v111
  %v1481 = vpop.permute.xlu0 %1480
  %1483 = vset.pattern.permute.xlu0 1
  %1484 = vperm.xlu0 %1483, %v112
  %v1485 = vpop.permute.xlu0 %1484
  %1487 = vset.pattern.permute.xlu0 1
  %1488 = vperm.xlu0 %1487, %v113
  %v1489 = vpop.permute.xlu0 %1488
  %1491 = vset.pattern.permute.xlu0 1
  %1492 = vperm.xlu0 %1491, %v114
  %v1493 = vpop.permute.xlu0 %1492
  %1495 = vset.pattern.permute.xlu0 1
  %1496 = vperm.xlu0 %1495, %v115
  %v1497 = vpop.permute.xlu0 %1496
  %1499 = vset.pattern.permute.xlu0 1
  %1500 = vperm.xlu0 %1499, %v116
  %v1501 = vpop.permute.xlu0 %1500
  %1503 = vset.pattern.permute.xlu0 1
  %1504 = vperm.xlu0 %1503, %v117
  %v1505 = vpop.permute.xlu0 %1504
  %1507 = vset.pattern.permute.xlu0 1
  %1508 = vperm.xlu0 %1507, %v118
  %v1509 = vpop.permute.xlu0 %1508
  %1511 = vset.pattern.permute.xlu0 1
  %1512 = vperm.xlu0 %1511, %v119
  %v1513 = vpop.permute.xlu0 %1512
  %1515 = vset.pattern.permute.xlu0 1
  %1516 = vperm.xlu0 %1515, %v120
  %v1517 = vpop.permute.xlu0 %1516
  %1519 = vset.pattern.permute.xlu0 1
  %1520 = vperm.xlu0 %1519, %v121
  %v1521 = vpop.permute.xlu0 %1520
  %1523 = vset.pattern.permute.xlu0 1
  %1524 = vperm.xlu0 %1523, %v122
  %v1525 = vpop.permute.xlu0 %1524
  %v1527 = vadd.f32 %v879, %v1097
  %v1528 = vadd.f32 %v880, %v1097
  %v1529 = vadd.f32 %v881, %v1101
  %v1530 = vadd.f32 %v882, %v1101
  %v1531 = vadd.f32 %v883, %v1105
  %v1532 = vadd.f32 %v884, %v1105
  %v1533 = vadd.f32 %v885, %v1109
  %v1534 = vadd.f32 %v886, %v1109
  %v1535 = vadd.f32 %v887, %v1113
  %v1536 = vadd.f32 %v888, %v1113
  %v1537 = vadd.f32 %v889, %v1117
  %v1538 = vadd.f32 %v890, %v1117
  %v1539 = vadd.f32 %v891, %v1121
  %v1540 = vadd.f32 %v892, %v1121
  %v1541 = vadd.f32 %v893, %v1125
  %v1542 = vadd.f32 %v894, %v1125
  %v1543 = vadd.f32 %v895, %v1129
  %v1544 = vadd.f32 %v896, %v1129
  %v1545 = vadd.f32 %v897, %v1133
  %v1546 = vadd.f32 %v898, %v1133
  %v1547 = vadd.f32 %v899, %v1137
  %v1548 = vadd.f32 %v900, %v1137
  %v1549 = vadd.f32 %v901, %v1141
  %v1550 = vadd.f32 %v902, %v1141
  %v1551 = vadd.f32 %v903, %v1145
  %v1552 = vadd.f32 %v904, %v1145
  %v1553 = vadd.f32 %v905, %v1149
  %v1554 = vadd.f32 %v906, %v1149
  %v1555 = vadd.f32 %v907, %v1153
  %v1556 = vadd.f32 %v908, %v1153
  %v1557 = vadd.f32 %v909, %v1157
  %v1558 = vadd.f32 %v910, %v1157
  %v1559 = vadd.f32 %v911, %v1161
  %v1560 = vadd.f32 %v912, %v1161
  %v1561 = vadd.f32 %v913, %v1165
  %v1562 = vadd.f32 %v914, %v1165
  %v1563 = vadd.f32 %v915, %v1169
  %v1564 = vadd.f32 %v916, %v1169
  %v1565 = vadd.f32 %v917, %v1173
  %v1566 = vadd.f32 %v918, %v1173
  %v1567 = vadd.f32 %v919, %v1177
  %v1568 = vadd.f32 %v920, %v1177
  %v1569 = vadd.f32 %v921, %v1181
  %v1570 = vadd.f32 %v922, %v1181
  %v1571 = vadd.f32 %v923, %v1185
  %v1572 = vadd.f32 %v924, %v1185
  %v1573 = vadd.f32 %v925, %v1189
  %v1574 = vadd.f32 %v926, %v1189
  %v1575 = vadd.f32 %v927, %v1193
  %v1576 = vadd.f32 %v928, %v1193
  %v1577 = vadd.f32 %v929, %v1197
  %v1578 = vadd.f32 %v930, %v1197
  %v1579 = vadd.f32 %v931, %v1201
  %v1580 = vadd.f32 %v932, %v1201
  %v1581 = vadd.f32 %v933, %v1205
  %v1582 = vadd.f32 %v934, %v1205
  %v1583 = vadd.f32 %v935, %v1209
  %v1584 = vadd.f32 %v936, %v1209
  %v1585 = vadd.f32 %v937, %v1213
  %v1586 = vadd.f32 %v938, %v1213
  %v1587 = vadd.f32 %v939, %v1217
  %v1588 = vadd.f32 %v940, %v1217
  %v1589 = vadd.f32 %v941, %v1221
  %v1590 = vadd.f32 %v942, %v1221
  %v1591 = vadd.f32 %v943, %v1225
  %v1592 = vadd.f32 %v944, %v1225
  %v1593 = vadd.f32 %v945, %v1229
  %v1594 = vadd.f32 %v946, %v1229
  %v1595 = vadd.f32 %v947, %v1233
  %v1596 = vadd.f32 %v948, %v1233
  %v1597 = vadd.f32 %v949, %v1237
  %v1598 = vadd.f32 %v950, %v1237
  %v1599 = vadd.f32 %v951, %v1241
  %v1600 = vadd.f32 %v952, %v1241
  %v1601 = vadd.f32 %v953, %v1245
  %v1602 = vadd.f32 %v954, %v1245
  %v1603 = vadd.f32 %v955, %v1249
  %v1604 = vadd.f32 %v956, %v1249
  %v1605 = vadd.f32 %v957, %v1253
  %v1606 = vadd.f32 %v958, %v1253
  %v1607 = vadd.f32 %v959, %v1257
  %v1608 = vadd.f32 %v960, %v1257
  %v1609 = vadd.f32 %v961, %v1261
  %v1610 = vadd.f32 %v962, %v1261
  %v1611 = vadd.f32 %v963, %v1265
  %v1612 = vadd.f32 %v964, %v1265
  %v1613 = vadd.f32 %v965, %v1269
  %v1614 = vadd.f32 %v966, %v1269
  %v1615 = vadd.f32 %v967, %v1273
  %v1616 = vadd.f32 %v968, %v1273
  %v1617 = vadd.f32 %v969, %v1277
  %v1618 = vadd.f32 %v970, %v1277
  %v1619 = vadd.f32 %v971, %v1281
  %v1620 = vadd.f32 %v972, %v1281
  %v1621 = vadd.f32 %v973, %v1285
  %v1622 = vadd.f32 %v974, %v1285
  %v1623 = vadd.f32 %v975, %v1289
  %v1624 = vadd.f32 %v976, %v1289
  %v1625 = vadd.f32 %v977, %v1293
  %v1626 = vadd.f32 %v978, %v1293
  %v1627 = vadd.f32 %v979, %v1297
  %v1628 = vadd.f32 %v980, %v1297
  %v1629 = vadd.f32 %v981, %v1301
  %v1630 = vadd.f32 %v982, %v1301
  %v1631 = vadd.f32 %v983, %v1305
  %v1632 = vadd.f32 %v984, %v1305
  %v1633 = vadd.f32 %v985, %v1309
  %v1634 = vadd.f32 %v986, %v1309
  %v1635 = vadd.f32 %v987, %v1313
  %v1636 = vadd.f32 %v988, %v1313
  %v1637 = vadd.f32 %v989, %v1317
  %v1638 = vadd.f32 %v990, %v1317
  %v1639 = vadd.f32 %v991, %v1321
  %v1640 = vadd.f32 %v992, %v1321
  %v1641 = vadd.f32 %v993, %v1325
  %v1642 = vadd.f32 %v994, %v1325
  %v1643 = vadd.f32 %v995, %v1329
  %v1644 = vadd.f32 %v996, %v1329
  %v1645 = vadd.f32 %v997, %v1333
  %v1646 = vadd.f32 %v998, %v1333
  %v1647 = vadd.f32 %v999, %v1337
  %v1648 = vadd.f32 %v1000, %v1337
  %v1649 = vadd.f32 %v1001, %v1341
  %v1650 = vadd.f32 %v1002, %v1341
  %v1651 = vadd.f32 %v1003, %v1345
  %v1652 = vadd.f32 %v1004, %v1345
  %v1653 = vadd.f32 %v1005, %v1349
  %v1654 = vadd.f32 %v1006, %v1349
  %v1655 = vadd.f32 %v1007, %v1353
  %v1656 = vadd.f32 %v1008, %v1353
  %v1657 = vadd.f32 %v1009, %v1357
  %v1658 = vadd.f32 %v1010, %v1357
  %v1659 = vadd.f32 %v1011, %v1361
  %v1660 = vadd.f32 %v1012, %v1361
  %v1661 = vadd.f32 %v1013, %v1365
  %v1662 = vadd.f32 %v1014, %v1365
  %v1663 = vadd.f32 %v1015, %v1369
  %v1664 = vadd.f32 %v1016, %v1369
  %v1665 = vadd.f32 %v1017, %v1373
  %v1666 = vadd.f32 %v1018, %v1373
  %v1667 = vadd.f32 %v1019, %v1377
  %v1668 = vadd.f32 %v1020, %v1377
  %v1669 = vadd.f32 %v1021, %v1381
  %v1670 = vadd.f32 %v1022, %v1381
  %v1671 = vadd.f32 %v1023, %v1385
  %v1672 = vadd.f32 %v1024, %v1385
  %v1673 = vadd.f32 %v1025, %v1389
  %v1674 = vadd.f32 %v1026, %v1389
  %v1675 = vadd.f32 %v1027, %v1393
  %v1676 = vadd.f32 %v1028, %v1393
  %v1677 = vadd.f32 %v1029, %v1397
  %v1678 = vadd.f32 %v1030, %v1397
  %v1679 = vadd.f32 %v1031, %v1401
  %v1680 = vadd.f32 %v1032, %v1401
  %v1681 = vadd.f32 %v1033, %v1405
  %v1682 = vadd.f32 %v1034, %v1405
  %v1683 = vadd.f32 %v1035, %v1409
  %v1684 = vadd.f32 %v1036, %v1409
  %v1685 = vadd.f32 %v1037, %v1413
  %v1686 = vadd.f32 %v1038, %v1413
  %v1687 = vadd.f32 %v1039, %v1417
  %v1688 = vadd.f32 %v1040, %v1417
  %v1689 = vadd.f32 %v1041, %v1421
  %v1690 = vadd.f32 %v1042, %v1421
  %v1691 = vadd.f32 %v1043, %v1425
  %v1692 = vadd.f32 %v1044, %v1425
  %v1693 = vadd.f32 %v1045, %v1429
  %v1694 = vadd.f32 %v1046, %v1429
  %v1695 = vadd.f32 %v1047, %v1433
  %v1696 = vadd.f32 %v1048, %v1433
  %v1697 = vadd.f32 %v1049, %v1437
  %v1698 = vadd.f32 %v1050, %v1437
  %v1699 = vadd.f32 %v1051, %v1441
  %v1700 = vadd.f32 %v1052, %v1441
  %v1701 = vadd.f32 %v1053, %v1445
  %v1702 = vadd.f32 %v1054, %v1445
  %v1703 = vadd.f32 %v1055, %v1449
  %v1704 = vadd.f32 %v1056, %v1449
  %v1705 = vadd.f32 %v1057, %v1453
  %v1706 = vadd.f32 %v1058, %v1453
  %v1707 = vadd.f32 %v1059, %v1457
  %v1708 = vadd.f32 %v1060, %v1457
  %v1709 = vadd.f32 %v1061, %v1461
  %v1710 = vadd.f32 %v1062, %v1461
  %v1711 = vadd.f32 %v1063, %v1465
  %v1712 = vadd.f32 %v1064, %v1465
  %v1713 = vadd.f32 %v1065, %v1469
  %v1714 = vadd.f32 %v1066, %v1469
  %v1715 = vadd.f32 %v1067, %v1473
  %v1716 = vadd.f32 %v1068, %v1473
  %v1717 = vadd.f32 %v1069, %v1477
  %v1718 = vadd.f32 %v1070, %v1477
  %v1719 = vadd.f32 %v1071, %v1481
  %v1720 = vadd.f32 %v1072, %v1481
  %v1721 = vadd.f32 %v1073, %v1485
  %v1722 = vadd.f32 %v1074, %v1485
  %v1723 = vadd.f32 %v1075, %v1489
  %v1724 = vadd.f32 %v1076, %v1489
  %v1725 = vadd.f32 %v1077, %v1493
  %v1726 = vadd.f32 %v1078, %v1493
  %v1727 = vadd.f32 %v1079, %v1497
  %v1728 = vadd.f32 %v1080, %v1497
  %v1729 = vadd.f32 %v1081, %v1501
  %v1730 = vadd.f32 %v1082, %v1501
  %v1731 = vadd.f32 %v1083, %v1505
  %v1732 = vadd.f32 %v1084, %v1505
  %v1733 = vadd.f32 %v1085, %v1509
  %v1734 = vadd.f32 %v1086, %v1509
  %v1735 = vadd.f32 %v1087, %v1513
  %v1736 = vadd.f32 %v1088, %v1513
  %v1737 = vadd.f32 %v1089, %v1517
  %v1738 = vadd.f32 %v1090, %v1517
  %v1739 = vadd.f32 %v1091, %v1521
  %v1740 = vadd.f32 %v1092, %v1521
  %v1741 = vadd.f32 %v1093, %v1525
  %v1742 = vadd.f32 %v1094, %v1525
  %v1743 = vmax.f32 %v1527, 0.0
  %v1744 = vmax.f32 %v1528, 0.0
  %v1745 = vmax.f32 %v1529, 0.0
  %v1746 = vmax.f32 %v1530, 0.0
  %v1747 = vmax.f32 %v1531, 0.0
  %v1748 = vmax.f32 %v1532, 0.0
  %v1749 = vmax.f32 %v1533, 0.0
  %v1750 = vmax.f32 %v1534, 0.0
  %v1751 = vmax.f32 %v1535, 0.0
  %v1752 = vmax.f32 %v1536, 0.0
  %v1753 = vmax.f32 %v1537, 0.0
  %v1754 = vmax.f32 %v1538, 0.0
  %v1755 = vmax.f32 %v1539, 0.0
  %v1756 = vmax.f32 %v1540, 0.0
  %v1757 = vmax.f32 %v1541, 0.0
  %v1758 = vmax.f32 %v1542, 0.0
  %v1759 = vmax.f32 %v1543, 0.0
  %v1760 = vmax.f32 %v1544, 0.0
  %v1761 = vmax.f32 %v1545, 0.0
  %v1762 = vmax.f32 %v1546, 0.0
  %v1763 = vmax.f32 %v1547, 0.0
  %v1764 = vmax.f32 %v1548, 0.0
  %v1765 = vmax.f32 %v1549, 0.0
  %v1766 = vmax.f32 %v1550, 0.0
  %v1767 = vmax.f32 %v1551, 0.0
  %v1768 = vmax.f32 %v1552, 0.0
  %v1769 = vmax.f32 %v1553, 0.0
  %v1770 = vmax.f32 %v1554, 0.0
  %v1771 = vmax.f32 %v1555, 0.0
  %v1772 = vmax.f32 %v1556, 0.0
  %v1773 = vmax.f32 %v1557, 0.0
  %v1774 = vmax.f32 %v1558, 0.0
  %v1775 = vmax.f32 %v1559, 0.0
  %v1776 = vmax.f32 %v1560, 0.0
  %v1777 = vmax.f32 %v1561, 0.0
  %v1778 = vmax.f32 %v1562, 0.0
  %v1779 = vmax.f32 %v1563, 0.0
  %v1780 = vmax.f32 %v1564, 0.0
  %v1781 = vmax.f32 %v1565, 0.0
  %v1782 = vmax.f32 %v1566, 0.0
  %v1783 = vmax.f32 %v1567, 0.0
  %v1784 = vmax.f32 %v1568, 0.0
  %v1785 = vmax.f32 %v1569, 0.0
  %v1786 = vmax.f32 %v1570, 0.0
  %v1787 = vmax.f32 %v1571, 0.0
  %v1788 = vmax.f32 %v1572, 0.0
  %v1789 = vmax.f32 %v1573, 0.0
  %v1790 = vmax.f32 %v1574, 0.0
  %v1791 = vmax.f32 %v1575, 0.0
  %v1792 = vmax.f32 %v1576, 0.0
  %v1793 = vmax.f32 %v1577, 0.0
  %v1794 = vmax.f32 %v1578, 0.0
  %v1795 = vmax.f32 %v1579, 0.0
  %v1796 = vmax.f32 %v1580, 0.0
  %v1797 = vmax.f32 %v1581, 0.0
  %v1798 = vmax.f32 %v1582, 0.0
  %v1799 = vmax.f32 %v1583, 0.0
  %v1800 = vmax.f32 %v1584, 0.0
  %v1801 = vmax.f32 %v1585, 0.0
  %v1802 = vmax.f32 %v1586, 0.0
  %v1803 = vmax.f32 %v1587, 0.0
  %v1804 = vmax.f32 %v1588, 0.0
  %v1805 = vmax.f32 %v1589, 0.0
  %v1806 = vmax.f32 %v1590, 0.0
  %v1807 = vmax.f32 %v1591, 0.0
  %v1808 = vmax.f32 %v1592, 0.0
  %v1809 = vmax.f32 %v1593, 0.0
  %v1810 = vmax.f32 %v1594, 0.0
  %v1811 = vmax.f32 %v1595, 0.0
  %v1812 = vmax.f32 %v1596, 0.0
  %v1813 = vmax.f32 %v1597, 0.0
  %v1814 = vmax.f32 %v1598, 0.0
  %v1815 = vmax.f32 %v1599, 0.0
  %v1816 = vmax.f32 %v1600, 0.0
  %v1817 = vmax.f32 %v1601, 0.0
  %v1818 = vmax.f32 %v1602, 0.0
  %v1819 = vmax.f32 %v1603, 0.0
  %v1820 = vmax.f32 %v1604, 0.0
  %v1821 = vmax.f32 %v1605, 0.0
  %v1822 = vmax.f32 %v1606, 0.0
  %v1823 = vmax.f32 %v1607, 0.0
  %v1824 = vmax.f32 %v1608, 0.0
  %v1825 = vmax.f32 %v1609, 0.0
  %v1826 = vmax.f32 %v1610, 0.0
  %v1827 = vmax.f32 %v1611, 0.0
  %v1828 = vmax.f32 %v1612, 0.0
  %v1829 = vmax.f32 %v1613, 0.0
  %v1830 = vmax.f32 %v1614, 0.0
  %v1831 = vmax.f32 %v1615, 0.0
  %v1832 = vmax.f32 %v1616, 0.0
  %v1833 = vmax.f32 %v1617, 0.0
  %v1834 = vmax.f32 %v1618, 0.0
  %v1835 = vmax.f32 %v1619, 0.0
  %v1836 = vmax.f32 %v1620, 0.0
  %v1837 = vmax.f32 %v1621, 0.0
  %v1838 = vmax.f32 %v1622, 0.0
  %v1839 = vmax.f32 %v1623, 0.0
  %v1840 = vmax.f32 %v1624, 0.0
  %v1841 = vmax.f32 %v1625, 0.0
  %v1842 = vmax.f32 %v1626, 0.0
  %v1843 = vmax.f32 %v1627, 0.0
  %v1844 = vmax.f32 %v1628, 0.0
  %v1845 = vmax.f32 %v1629, 0.0
  %v1846 = vmax.f32 %v1630, 0.0
  %v1847 = vmax.f32 %v1631, 0.0
  %v1848 = vmax.f32 %v1632, 0.0
  %v1849 = vmax.f32 %v1633, 0.0
  %v1850 = vmax.f32 %v1634, 0.0
  %v1851 = vmax.f32 %v1635, 0.0
  %v1852 = vmax.f32 %v1636, 0.0
  %v1853 = vmax.f32 %v1637, 0.0
  %v1854 = vmax.f32 %v1638, 0.0
  %v1855 = vmax.f32 %v1639, 0.0
  %v1856 = vmax.f32 %v1640, 0.0
  %v1857 = vmax.f32 %v1641, 0.0
  %v1858 = vmax.f32 %v1642, 0.0
  %v1859 = vmax.f32 %v1643, 0.0
  %v1860 = vmax.f32 %v1644, 0.0
  %v1861 = vmax.f32 %v1645, 0.0
  %v1862 = vmax.f32 %v1646, 0.0
  %v1863 = vmax.f32 %v1647, 0.0
  %v1864 = vmax.f32 %v1648, 0.0
  %v1865 = vmax.f32 %v1649, 0.0
  %v1866 = vmax.f32 %v1650, 0.0
  %v1867 = vmax.f32 %v1651, 0.0
  %v1868 = vmax.f32 %v1652, 0.0
  %v1869 = vmax.f32 %v1653, 0.0
  %v1870 = vmax.f32 %v1654, 0.0
  %v1871 = vmax.f32 %v1655, 0.0
  %v1872 = vmax.f32 %v1656, 0.0
  %v1873 = vmax.f32 %v1657, 0.0
  %v1874 = vmax.f32 %v1658, 0.0
  %v1875 = vmax.f32 %v1659, 0.0
  %v1876 = vmax.f32 %v1660, 0.0
  %v1877 = vmax.f32 %v1661, 0.0
  %v1878 = vmax.f32 %v1662, 0.0
  %v1879 = vmax.f32 %v1663, 0.0
  %v1880 = vmax.f32 %v1664, 0.0
  %v1881 = vmax.f32 %v1665, 0.0
  %v1882 = vmax.f32 %v1666, 0.0
  %v1883 = vmax.f32 %v1667, 0.0
  %v1884 = vmax.f32 %v1668, 0.0
  %v1885 = vmax.f32 %v1669, 0.0
  %v1886 = vmax.f32 %v1670, 0.0
  %v1887 = vmax.f32 %v1671, 0.0
  %v1888 = vmax.f32 %v1672, 0.0
  %v1889 = vmax.f32 %v1673, 0.0
  %v1890 = vmax.f32 %v1674, 0.0
  %v1891 = vmax.f32 %v1675, 0.0
  %v1892 = vmax.f32 %v1676, 0.0
  %v1893 = vmax.f32 %v1677, 0.0
  %v1894 = vmax.f32 %v1678, 0.0
  %v1895 = vmax.f32 %v1679, 0.0
  %v1896 = vmax.f32 %v1680, 0.0
  %v1897 = vmax.f32 %v1681, 0.0
  %v1898 = vmax.f32 %v1682, 0.0
  %v1899 = vmax.f32 %v1683, 0.0
  %v1900 = vmax.f32 %v1684, 0.0
  %v1901 = vmax.f32 %v1685, 0.0
  %v1902 = vmax.f32 %v1686, 0.0
  %v1903 = vmax.f32 %v1687, 0.0
  %v1904 = vmax.f32 %v1688, 0.0
  %v1905 = vmax.f32 %v1689, 0.0
  %v1906 = vmax.f32 %v1690, 0.0
  %v1907 = vmax.f32 %v1691, 0.0
  %v1908 = vmax.f32 %v1692, 0.0
  %v1909 = vmax.f32 %v1693, 0.0
  %v1910 = vmax.f32 %v1694, 0.0
  %v1911 = vmax.f32 %v1695, 0.0
  %v1912 = vmax.f32 %v1696, 0.0
  %v1913 = vmax.f32 %v1697, 0.0
  %v1914 = vmax.f32 %v1698, 0.0
  %v1915 = vmax.f32 %v1699, 0.0
  %v1916 = vmax.f32 %v1700, 0.0
  %v1917 = vmax.f32 %v1701, 0.0
  %v1918 = vmax.f32 %v1702, 0.0
  %v1919 = vmax.f32 %v1703, 0.0
  %v1920 = vmax.f32 %v1704, 0.0
  %v1921 = vmax.f32 %v1705, 0.0
  %v1922 = vmax.f32 %v1706, 0.0
  %v1923 = vmax.f32 %v1707, 0.0
  %v1924 = vmax.f32 %v1708, 0.0
  %v1925 = vmax.f32 %v1709, 0.0
  %v1926 = vmax.f32 %v1710, 0.0
  %v1927 = vmax.f32 %v1711, 0.0
  %v1928 = vmax.f32 %v1712, 0.0
  %v1929 = vmax.f32 %v1713, 0.0
  %v1930 = vmax.f32 %v1714, 0.0
  %v1931 = vmax.f32 %v1715, 0.0
  %v1932 = vmax.f32 %v1716, 0.0
  %v1933 = vmax.f32 %v1717, 0.0
  %v1934 = vmax.f32 %v1718, 0.0
  %v1935 = vmax.f32 %v1719, 0.0
  %v1936 = vmax.f32 %v1720, 0.0
  %v1937 = vmax.f32 %v1721, 0.0
  %v1938 = vmax.f32 %v1722, 0.0
  %v1939 = vmax.f32 %v1723, 0.0
  %v1940 = vmax.f32 %v1724, 0.0
  %v1941 = vmax.f32 %v1725, 0.0
  %v1942 = vmax.f32 %v1726, 0.0
  %v1943 = vmax.f32 %v1727, 0.0
  %v1944 = vmax.f32 %v1728, 0.0
  %v1945 = vmax.f32 %v1729, 0.0
  %v1946 = vmax.f32 %v1730, 0.0
  %v1947 = vmax.f32 %v1731, 0.0
  %v1948 = vmax.f32 %v1732, 0.0
  %v1949 = vmax.f32 %v1733, 0.0
  %v1950 = vmax.f32 %v1734, 0.0
  %v1951 = vmax.f32 %v1735, 0.0
  %v1952 = vmax.f32 %v1736, 0.0
  %v1953 = vmax.f32 %v1737, 0.0
  %v1954 = vmax.f32 %v1738, 0.0
  %v1955 = vmax.f32 %v1739, 0.0
  %v1956 = vmax.f32 %v1740, 0.0
  %v1957 = vmax.f32 %v1741, 0.0
  %v1958 = vmax.f32 %v1742, 0.0
  %v1959 = vpack.c.bf16 %v1745, %v1743
  %v1960 = vpack.c.bf16 %v1746, %v1744
  %v1961 = vpack.c.bf16 %v1749, %v1747
  %v1962 = vpack.c.bf16 %v1750, %v1748
  %v1963 = vpack.c.bf16 %v1753, %v1751
  %v1964 = vpack.c.bf16 %v1754, %v1752
  %v1965 = vpack.c.bf16 %v1757, %v1755
  %v1966 = vpack.c.bf16 %v1758, %v1756
  %v1967 = vpack.c.bf16 %v1761, %v1759
  %v1968 = vpack.c.bf16 %v1762, %v1760
  %v1969 = vpack.c.bf16 %v1765, %v1763
  %v1970 = vpack.c.bf16 %v1766, %v1764
  %v1971 = vpack.c.bf16 %v1769, %v1767
  %v1972 = vpack.c.bf16 %v1770, %v1768
  %v1973 = vpack.c.bf16 %v1773, %v1771
  %v1974 = vpack.c.bf16 %v1774, %v1772
  %v1975 = vpack.c.bf16 %v1777, %v1775
  %v1976 = vpack.c.bf16 %v1778, %v1776
  %v1977 = vpack.c.bf16 %v1781, %v1779
  %v1978 = vpack.c.bf16 %v1782, %v1780
  %v1979 = vpack.c.bf16 %v1785, %v1783
  %v1980 = vpack.c.bf16 %v1786, %v1784
  %v1981 = vpack.c.bf16 %v1789, %v1787
  %v1982 = vpack.c.bf16 %v1790, %v1788
  %v1983 = vpack.c.bf16 %v1793, %v1791
  %v1984 = vpack.c.bf16 %v1794, %v1792
  %v1985 = vpack.c.bf16 %v1797, %v1795
  %v1986 = vpack.c.bf16 %v1798, %v1796
  %v1987 = vpack.c.bf16 %v1801, %v1799
  %v1988 = vpack.c.bf16 %v1802, %v1800
  %v1989 = vpack.c.bf16 %v1805, %v1803
  %v1990 = vpack.c.bf16 %v1806, %v1804
  %v1991 = vpack.c.bf16 %v1809, %v1807
  %v1992 = vpack.c.bf16 %v1810, %v1808
  %v1993 = vpack.c.bf16 %v1813, %v1811
  %v1994 = vpack.c.bf16 %v1814, %v1812
  %v1995 = vpack.c.bf16 %v1817, %v1815
  %v1996 = vpack.c.bf16 %v1818, %v1816
  %v1997 = vpack.c.bf16 %v1821, %v1819
  %v1998 = vpack.c.bf16 %v1822, %v1820
  %v1999 = vpack.c.bf16 %v1825, %v1823
  %v2000 = vpack.c.bf16 %v1826, %v1824
  %v2001 = vpack.c.bf16 %v1829, %v1827
  %v2002 = vpack.c.bf16 %v1830, %v1828
  %v2003 = vpack.c.bf16 %v1833, %v1831
  %v2004 = vpack.c.bf16 %v1834, %v1832
  %v2005 = vpack.c.bf16 %v1837, %v1835
  %v2006 = vpack.c.bf16 %v1838, %v1836
  %v2007 = vpack.c.bf16 %v1841, %v1839
  %v2008 = vpack.c.bf16 %v1842, %v1840
  %v2009 = vpack.c.bf16 %v1845, %v1843
  %v2010 = vpack.c.bf16 %v1846, %v1844
  %v2011 = vpack.c.bf16 %v1849, %v1847
  %v2012 = vpack.c.bf16 %v1850, %v1848
  %v2013 = vpack.c.bf16 %v1853, %v1851
  %v2014 = vpack.c.bf16 %v1854, %v1852
  %v2015 = vpack.c.bf16 %v1857, %v1855
  %v2016 = vpack.c.bf16 %v1858, %v1856
  %v2017 = vpack.c.bf16 %v1861, %v1859
  %v2018 = vpack.c.bf16 %v1862, %v1860
  %v2019 = vpack.c.bf16 %v1865, %v1863
  %v2020 = vpack.c.bf16 %v1866, %v1864
  %v2021 = vpack.c.bf16 %v1869, %v1867
  %v2022 = vpack.c.bf16 %v1870, %v1868
  %v2023 = vpack.c.bf16 %v1873, %v1871
  %v2024 = vpack.c.bf16 %v1874, %v1872
  %v2025 = vpack.c.bf16 %v1877, %v1875
  %v2026 = vpack.c.bf16 %v1878, %v1876
  %v2027 = vpack.c.bf16 %v1881, %v1879
  %v2028 = vpack.c.bf16 %v1882, %v1880
  %v2029 = vpack.c.bf16 %v1885, %v1883
  %v2030 = vpack.c.bf16 %v1886, %v1884
  %v2031 = vpack.c.bf16 %v1889, %v1887
  %v2032 = vpack.c.bf16 %v1890, %v1888
  %v2033 = vpack.c.bf16 %v1893, %v1891
  %v2034 = vpack.c.bf16 %v1894, %v1892
  %v2035 = vpack.c.bf16 %v1897, %v1895
  %v2036 = vpack.c.bf16 %v1898, %v1896
  %v2037 = vpack.c.bf16 %v1901, %v1899
  %v2038 = vpack.c.bf16 %v1902, %v1900
  %v2039 = vpack.c.bf16 %v1905, %v1903
  %v2040 = vpack.c.bf16 %v1906, %v1904
  %v2041 = vpack.c.bf16 %v1909, %v1907
  %v2042 = vpack.c.bf16 %v1910, %v1908
  %v2043 = vpack.c.bf16 %v1913, %v1911
  %v2044 = vpack.c.bf16 %v1914, %v1912
  %v2045 = vpack.c.bf16 %v1917, %v1915
  %v2046 = vpack.c.bf16 %v1918, %v1916
  %v2047 = vpack.c.bf16 %v1921, %v1919
  %v2048 = vpack.c.bf16 %v1922, %v1920
  %v2049 = vpack.c.bf16 %v1925, %v1923
  %v2050 = vpack.c.bf16 %v1926, %v1924
  %v2051 = vpack.c.bf16 %v1929, %v1927
  %v2052 = vpack.c.bf16 %v1930, %v1928
  %v2053 = vpack.c.bf16 %v1933, %v1931
  %v2054 = vpack.c.bf16 %v1934, %v1932
  %v2055 = vpack.c.bf16 %v1937, %v1935
  %v2056 = vpack.c.bf16 %v1938, %v1936
  %v2057 = vpack.c.bf16 %v1941, %v1939
  %v2058 = vpack.c.bf16 %v1942, %v1940
  %v2059 = vpack.c.bf16 %v1945, %v1943
  %v2060 = vpack.c.bf16 %v1946, %v1944
  %v2061 = vpack.c.bf16 %v1949, %v1947
  %v2062 = vpack.c.bf16 %v1950, %v1948
  %v2063 = vpack.c.bf16 %v1953, %v1951
  %v2064 = vpack.c.bf16 %v1954, %v1952
  %v2065 = vpack.c.bf16 %v1957, %v1955
  %v2066 = vpack.c.bf16 %v1958, %v1956
  %v2067 = vld [vmem:[%s2] sm:$0xff]
  %v2068 = vld [vmem:[%s2 + $0x8] sm:$0xff]
  %v2069 = vld [vmem:[%s2 + $0x10] sm:$0xff]
  %v2070 = vld [vmem:[%s2 + $0x18] sm:$0xff]
  %v2071 = vld [vmem:[%s2 + $0x20] sm:$0xff]
  %v2072 = vld [vmem:[%s2 + $0x28] sm:$0xff]
  %v2073 = vld [vmem:[%s2 + $0x30] sm:$0xff]
  %v2074 = vld [vmem:[%s2 + $0x38] sm:$0xff]
  %v2075 = vld [vmem:[%s2 + $0x40] sm:$0xff]
  %v2076 = vld [vmem:[%s2 + $0x48] sm:$0xff]
  %v2077 = vld [vmem:[%s2 + $0x50] sm:$0xff]
  %v2078 = vld [vmem:[%s2 + $0x58] sm:$0xff]
  %v2079 = vld [vmem:[%s2 + $0x60] sm:$0xff]
  %v2080 = vld [vmem:[%s2 + $0x68] sm:$0xff]
  %v2081 = vld [vmem:[%s2 + $0x70] sm:$0xff]
  %v2082 = vld [vmem:[%s2 + $0x78] sm:$0xff]
  %v2083 = vld [vmem:[%s2 + $0x80] sm:$0xff]
  %v2084 = vld [vmem:[%s2 + $0x88] sm:$0xff]
  %v2085 = vld [vmem:[%s2 + $0x90] sm:$0xff]
  %v2086 = vld [vmem:[%s2 + $0x98] sm:$0xff]
  %v2087 = vld [vmem:[%s2 + $0xa0] sm:$0xff]
  %v2088 = vld [vmem:[%s2 + $0xa8] sm:$0xff]
  %v2089 = vld [vmem:[%s2 + $0xb0] sm:$0xff]
  %v2090 = vld [vmem:[%s2 + $0xb8] sm:$0xff]
  %v2091 = vld [vmem:[%s2 + $0xc0] sm:$0xff]
  %v2092 = vld [vmem:[%s2 + $0xc8] sm:$0xff]
  %v2093 = vld [vmem:[%s2 + $0xd0] sm:$0xff]
  %v2094 = vld [vmem:[%s2 + $0xd8] sm:$0xff]
  %v2095 = vld [vmem:[%s2 + $0xe0] sm:$0xff]
  %v2096 = vld [vmem:[%s2 + $0xe8] sm:$0xff]
  %v2097 = vld [vmem:[%s2 + $0xf0] sm:$0xff]
  %v2098 = vld [vmem:[%s2 + $0xf8] sm:$0xff]
  %v2099 = vld [vmem:[%s2 + $0x100] sm:$0xff]
  %v2100 = vld [vmem:[%s2 + $0x108] sm:$0xff]
  %v2101 = vld [vmem:[%s2 + $0x110] sm:$0xff]
  %v2102 = vld [vmem:[%s2 + $0x118] sm:$0xff]
  %v2103 = vld [vmem:[%s2 + $0x120] sm:$0xff]
  %v2104 = vld [vmem:[%s2 + $0x128] sm:$0xff]
  %v2105 = vld [vmem:[%s2 + $0x130] sm:$0xff]
  %v2106 = vld [vmem:[%s2 + $0x138] sm:$0xff]
  %v2107 = vld [vmem:[%s2 + $0x140] sm:$0xff]
  %v2108 = vld [vmem:[%s2 + $0x148] sm:$0xff]
  %v2109 = vld [vmem:[%s2 + $0x150] sm:$0xff]
  %v2110 = vld [vmem:[%s2 + $0x158] sm:$0xff]
  %v2111 = vld [vmem:[%s2 + $0x160] sm:$0xff]
  %v2112 = vld [vmem:[%s2 + $0x168] sm:$0xff]
  %v2113 = vld [vmem:[%s2 + $0x170] sm:$0xff]
  %v2114 = vld [vmem:[%s2 + $0x178] sm:$0xff]
  %v2115 = vld [vmem:[%s2 + $0x180] sm:$0xff]
  %v2116 = vld [vmem:[%s2 + $0x188] sm:$0xff]
  %v2117 = vld [vmem:[%s2 + $0x190] sm:$0xff]
  %v2118 = vld [vmem:[%s2 + $0x198] sm:$0xff]
  %v2119 = vld [vmem:[%s2 + $0x1a0] sm:$0xff]
  %v2120 = vld [vmem:[%s2 + $0x1a8] sm:$0xff]
  %v2121 = vld [vmem:[%s2 + $0x1b0] sm:$0xff]
  %v2122 = vld [vmem:[%s2 + $0x1b8] sm:$0xff]
  %v2123 = vld [vmem:[%s2 + $0x1c0] sm:$0xff]
  %v2124 = vld [vmem:[%s2 + $0x1c8] sm:$0xff]
  %v2125 = vld [vmem:[%s2 + $0x1d0] sm:$0xff]
  %v2126 = vld [vmem:[%s2 + $0x1d8] sm:$0xff]
  %v2127 = vld [vmem:[%s2 + $0x1e0] sm:$0xff]
  %v2128 = vld [vmem:[%s2 + $0x1e8] sm:$0xff]
  %v2129 = vld [vmem:[%s2 + $0x1f0] sm:$0xff]
  %v2130 = vld [vmem:[%s2 + $0x1f8] sm:$0xff]
  %v2131 = vld [vmem:[%s2 + $0x200] sm:$0xff]
  %v2132 = vld [vmem:[%s2 + $0x208] sm:$0xff]
  %v2133 = vld [vmem:[%s2 + $0x210] sm:$0xff]
  %v2134 = vld [vmem:[%s2 + $0x218] sm:$0xff]
  %v2135 = vld [vmem:[%s2 + $0x220] sm:$0xff]
  %v2136 = vld [vmem:[%s2 + $0x228] sm:$0xff]
  %v2137 = vld [vmem:[%s2 + $0x230] sm:$0xff]
  %v2138 = vld [vmem:[%s2 + $0x238] sm:$0xff]
  %v2139 = vld [vmem:[%s2 + $0x240] sm:$0xff]
  %v2140 = vld [vmem:[%s2 + $0x248] sm:$0xff]
  %v2141 = vld [vmem:[%s2 + $0x250] sm:$0xff]
  %v2142 = vld [vmem:[%s2 + $0x258] sm:$0xff]
  %v2143 = vld [vmem:[%s2 + $0x260] sm:$0xff]
  %v2144 = vld [vmem:[%s2 + $0x268] sm:$0xff]
  %v2145 = vld [vmem:[%s2 + $0x270] sm:$0xff]
  %v2146 = vld [vmem:[%s2 + $0x278] sm:$0xff]
  %v2147 = vld [vmem:[%s2 + $0x280] sm:$0xff]
  %v2148 = vld [vmem:[%s2 + $0x288] sm:$0xff]
  %v2149 = vld [vmem:[%s2 + $0x290] sm:$0xff]
  %v2150 = vld [vmem:[%s2 + $0x298] sm:$0xff]
  %v2151 = vld [vmem:[%s2 + $0x2a0] sm:$0xff]
  %v2152 = vld [vmem:[%s2 + $0x2a8] sm:$0xff]
  %v2153 = vld [vmem:[%s2 + $0x2b0] sm:$0xff]
  %v2154 = vld [vmem:[%s2 + $0x2b8] sm:$0xff]
  %v2155 = vld [vmem:[%s2 + $0x2c0] sm:$0xff]
  %v2156 = vld [vmem:[%s2 + $0x2c8] sm:$0xff]
  %v2157 = vld [vmem:[%s2 + $0x2d0] sm:$0xff]
  %v2158 = vld [vmem:[%s2 + $0x2d8] sm:$0xff]
  %v2159 = vld [vmem:[%s2 + $0x2e0] sm:$0xff]
  %v2160 = vld [vmem:[%s2 + $0x2e8] sm:$0xff]
  %v2161 = vld [vmem:[%s2 + $0x2f0] sm:$0xff]
  %v2162 = vld [vmem:[%s2 + $0x2f8] sm:$0xff]
  %v2163 = vld [vmem:[%s2 + $0x300] sm:$0xff]
  %v2164 = vld [vmem:[%s2 + $0x308] sm:$0xff]
  %v2165 = vld [vmem:[%s2 + $0x310] sm:$0xff]
  %v2166 = vld [vmem:[%s2 + $0x318] sm:$0xff]
  %v2167 = vld [vmem:[%s2 + $0x320] sm:$0xff]
  %v2168 = vld [vmem:[%s2 + $0x328] sm:$0xff]
  %v2169 = vld [vmem:[%s2 + $0x330] sm:$0xff]
  %v2170 = vld [vmem:[%s2 + $0x338] sm:$0xff]
  %v2171 = vld [vmem:[%s2 + $0x340] sm:$0xff]
  %v2172 = vld [vmem:[%s2 + $0x348] sm:$0xff]
  %v2173 = vld [vmem:[%s2 + $0x350] sm:$0xff]
  %v2174 = vld [vmem:[%s2 + $0x358] sm:$0xff]
  %v2175 = vld [vmem:[%s2 + $0x360] sm:$0xff]
  %v2176 = vld [vmem:[%s2 + $0x368] sm:$0xff]
  %v2177 = vld [vmem:[%s2 + $0x370] sm:$0xff]
  %v2178 = vld [vmem:[%s2 + $0x378] sm:$0xff]
  %v2179 = vpack.c.bf16 %v2074, %v2067
  %v2180 = vpack.c.bf16 %v2075, %v2068
  %v2181 = vpack.c.bf16 %v2076, %v2069
  %v2182 = vpack.c.bf16 %v2077, %v2070
  %v2183 = vpack.c.bf16 %v2078, %v2071
  %v2184 = vpack.c.bf16 %v2079, %v2072
  %v2185 = vpack.c.bf16 %v2080, %v2073
  %v2186 = vpack.c.bf16 %v2088, %v2081
  %v2187 = vpack.c.bf16 %v2089, %v2082
  %v2188 = vpack.c.bf16 %v2090, %v2083
  %v2189 = vpack.c.bf16 %v2091, %v2084
  %v2190 = vpack.c.bf16 %v2092, %v2085
  %v2191 = vpack.c.bf16 %v2093, %v2086
  %v2192 = vpack.c.bf16 %v2094, %v2087
  %v2193 = vpack.c.bf16 %v2102, %v2095
  %v2194 = vpack.c.bf16 %v2103, %v2096
  %v2195 = vpack.c.bf16 %v2104, %v2097
  %v2196 = vpack.c.bf16 %v2105, %v2098
  %v2197 = vpack.c.bf16 %v2106, %v2099
  %v2198 = vpack.c.bf16 %v2107, %v2100
  %v2199 = vpack.c.bf16 %v2108, %v2101
  %v2200 = vpack.c.bf16 %v2116, %v2109
  %v2201 = vpack.c.bf16 %v2117, %v2110
  %v2202 = vpack.c.bf16 %v2118, %v2111
  %v2203 = vpack.c.bf16 %v2119, %v2112
  %v2204 = vpack.c.bf16 %v2120, %v2113
  %v2205 = vpack.c.bf16 %v2121, %v2114
  %v2206 = vpack.c.bf16 %v2122, %v2115
  %v2207 = vpack.c.bf16 %v2130, %v2123
  %v2208 = vpack.c.bf16 %v2131, %v2124
  %v2209 = vpack.c.bf16 %v2132, %v2125
  %v2210 = vpack.c.bf16 %v2133, %v2126
  %v2211 = vpack.c.bf16 %v2134, %v2127
  %v2212 = vpack.c.bf16 %v2135, %v2128
  %v2213 = vpack.c.bf16 %v2136, %v2129
  %v2214 = vpack.c.bf16 %v2144, %v2137
  %v2215 = vpack.c.bf16 %v2145, %v2138
  %v2216 = vpack.c.bf16 %v2146, %v2139
  %v2217 = vpack.c.bf16 %v2147, %v2140
  %v2218 = vpack.c.bf16 %v2148, %v2141
  %v2219 = vpack.c.bf16 %v2149, %v2142
  %v2220 = vpack.c.bf16 %v2150, %v2143
  %v2221 = vpack.c.bf16 %v2158, %v2151
  %v2222 = vpack.c.bf16 %v2159, %v2152
  %v2223 = vpack.c.bf16 %v2160, %v2153
  %v2224 = vpack.c.bf16 %v2161, %v2154
  %v2225 = vpack.c.bf16 %v2162, %v2155
  %v2226 = vpack.c.bf16 %v2163, %v2156
  %v2227 = vpack.c.bf16 %v2164, %v2157
  %v2228 = vpack.c.bf16 %v2172, %v2165
  %v2229 = vpack.c.bf16 %v2173, %v2166
  %v2230 = vpack.c.bf16 %v2174, %v2167
  %v2231 = vpack.c.bf16 %v2175, %v2168
  %v2232 = vpack.c.bf16 %v2176, %v2169
  %v2233 = vpack.c.bf16 %v2177, %v2170
  %v2234 = vpack.c.bf16 %v2178, %v2171
  %vm2235 = vcmask 785408
  %v2237 = vsel %vm2235, %v2185, 0
  %v2240 = vsel %vm2235, %v2192, 0
  %v2243 = vsel %vm2235, %v2199, 0
  %v2246 = vsel %vm2235, %v2206, 0
  %v2249 = vsel %vm2235, %v2213, 0
  %v2252 = vsel %vm2235, %v2220, 0
  %v2255 = vsel %vm2235, %v2227, 0
  %v2258 = vsel %vm2235, %v2234, 0
  %2260 = vmatprep.subr.bf16.mxu0 %v1960
  %2261 = vmatpush1.bf16.msra.mxu0 %v1959
  %2262 = vmatprep.subr.bf16.mxu0 %v1962
  %2263 = vmatpush1.bf16.msra.mxu0 %v1961
  %2264 = vmatprep.subr.bf16.mxu0 %v1964
  %2265 = vmatpush1.bf16.msra.mxu0 %v1963
  %2266 = vmatprep.subr.bf16.mxu0 %v1966
  %2267 = vmatpush1.bf16.msra.mxu0 %v1965
  %2268 = vmatprep.subr.bf16.mxu0 %v1968
  %2269 = vmatpush1.bf16.msra.mxu0 %v1967
  %2270 = vmatprep.subr.bf16.mxu0 %v1970
  %2271 = vmatpush1.bf16.msra.mxu0 %v1969
  %2272 = vmatprep.subr.bf16.mxu0 %v1972
  %2273 = vmatpush1.bf16.msra.mxu0 %v1971
  %2274 = vmatprep.subr.bf16.mxu0 %v1974
  %2275 = vmatpush1.bf16.msra.mxu0 %v1973
  %2276 = vmatprep.subr.bf16.mxu0 %v1976
  %2277 = vmatpush1.bf16.msra.mxu0 %v1975
  %2278 = vmatprep.subr.bf16.mxu0 %v1978
  %2279 = vmatpush1.bf16.msra.mxu0 %v1977
  %2280 = vmatprep.subr.bf16.mxu0 %v1980
  %2281 = vmatpush1.bf16.msra.mxu0 %v1979
  %2282 = vmatprep.subr.bf16.mxu0 %v1982
  %2283 = vmatpush1.bf16.msra.mxu0 %v1981
  %2284 = vmatprep.subr.bf16.mxu0 %v1984
  %2285 = vmatpush1.bf16.msra.mxu0 %v1983
  %2286 = vmatprep.subr.bf16.mxu0 %v1986
  %2287 = vmatpush1.bf16.msra.mxu0 %v1985
  %2288 = vmatprep.subr.bf16.mxu0 %v1988
  %2289 = vmatpush1.bf16.msra.mxu0 %v1987
  %2290 = vmatprep.subr.bf16.mxu0 %v1990
  %2291 = vmatpush1.bf16.msra.mxu0 %v1989
  %2292 = vmatprep.mubr.bf16.mxu0 %v2180
  %2293 = vmatmul.mubr.bf16.gmra.mrb[0].mxu0 %v2179
  %v2294 = vpop.f32.mrb[0].mxu0
  %v2295 = vadd.f32 0.0, %v2294
  %v2296 = vpop.f32.mrb[0].mxu0
  %v2297 = vadd.f32 0.0, %v2296
  %v2298 = vpop.f32.mrb[0].mxu0
  %v2299 = vadd.f32 0.0, %v2298
  %v2300 = vpop.f32.mrb[0].mxu0
  %v2301 = vadd.f32 0.0, %v2300
  %2302 = vmatprep.mubr.bf16.mxu0 %v2187
  %2303 = vmatmul.mubr.bf16.gmra.mrb[0].mxu0 %v2186
  %v2304 = vpop.f32.mrb[0].mxu0
  %v2305 = vadd.f32 0.0, %v2304
  %v2306 = vpop.f32.mrb[0].mxu0
  %v2307 = vadd.f32 0.0, %v2306
  %v2308 = vpop.f32.mrb[0].mxu0
  %v2309 = vadd.f32 0.0, %v2308
  %v2310 = vpop.f32.mrb[0].mxu0
  %v2311 = vadd.f32 0.0, %v2310
  %2312 = vmatprep.mubr.bf16.mxu0 %v2194
  %2313 = vmatmul.mubr.bf16.gmra.mrb[0].mxu0 %v2193
  %v2314 = vpop.f32.mrb[0].mxu0
  %v2315 = vadd.f32 0.0, %v2314
  %v2316 = vpop.f32.mrb[0].mxu0
  %v2317 = vadd.f32 0.0, %v2316
  %v2318 = vpop.f32.mrb[0].mxu0
  %v2319 = vadd.f32 0.0, %v2318
  %v2320 = vpop.f32.mrb[0].mxu0
  %v2321 = vadd.f32 0.0, %v2320
  %2322 = vmatprep.mubr.bf16.mxu0 %v2201
  %2323 = vmatmul.mubr.bf16.gmra.mrb[0].mxu0 %v2200
  %v2324 = vpop.f32.mrb[0].mxu0
  %v2325 = vadd.f32 0.0, %v2324
  %v2326 = vpop.f32.mrb[0].mxu0
  %v2327 = vadd.f32 0.0, %v2326
  %v2328 = vpop.f32.mrb[0].mxu0
  %v2329 = vadd.f32 0.0, %v2328
  %v2330 = vpop.f32.mrb[0].mxu0
  %v2331 = vadd.f32 0.0, %v2330
  %2332 = vmatprep.mubr.bf16.mxu0 %v2208
  %2333 = vmatmul.mubr.bf16.gmra.mrb[0].mxu0 %v2207
  %v2334 = vpop.f32.mrb[0].mxu0
  %v2335 = vadd.f32 0.0, %v2334
  %v2336 = vpop.f32.mrb[0].mxu0
  %v2337 = vadd.f32 0.0, %v2336
  %v2338 = vpop.f32.mrb[0].mxu0
  %v2339 = vadd.f32 0.0, %v2338
  %v2340 = vpop.f32.mrb[0].mxu0
  %v2341 = vadd.f32 0.0, %v2340
  %2342 = vmatprep.mubr.bf16.mxu0 %v2215
  %2343 = vmatmul.mubr.bf16.gmra.mrb[0].mxu0 %v2214
  %v2344 = vpop.f32.mrb[0].mxu0
  %v2345 = vadd.f32 0.0, %v2344
  %v2346 = vpop.f32.mrb[0].mxu0
  %v2347 = vadd.f32 0.0, %v2346
  %v2348 = vpop.f32.mrb[0].mxu0
  %v2349 = vadd.f32 0.0, %v2348
  %v2350 = vpop.f32.mrb[0].mxu0
  %v2351 = vadd.f32 0.0, %v2350
  %2352 = vmatprep.mubr.bf16.mxu0 %v2222
  %2353 = vmatmul.mubr.bf16.gmra.mrb[0].mxu0 %v2221
  %v2354 = vpop.f32.mrb[0].mxu0
  %v2355 = vadd.f32 0.0, %v2354
  %v2356 = vpop.f32.mrb[0].mxu0
  %v2357 = vadd.f32 0.0, %v2356
  %v2358 = vpop.f32.mrb[0].mxu0
  %v2359 = vadd.f32 0.0, %v2358
  %v2360 = vpop.f32.mrb[0].mxu0
  %v2361 = vadd.f32 0.0, %v2360
  %2362 = vmatprep.mubr.bf16.mxu0 %v2229
  %2363 = vmatmul.mubr.bf16.gmra.mrb[0].mxu0 %v2228
  %v2364 = vpop.f32.mrb[0].mxu0
  %v2365 = vadd.f32 0.0, %v2364
  %v2366 = vpop.f32.mrb[0].mxu0
  %v2367 = vadd.f32 0.0, %v2366
  %v2368 = vpop.f32.mrb[0].mxu0
  %v2369 = vadd.f32 0.0, %v2368
  %v2370 = vpop.f32.mrb[0].mxu0
  %v2371 = vadd.f32 0.0, %v2370
  %2372 = vdwg.mxu0
  %2373 = vmatprep.subr.bf16.mxu0 %v1992
  %2374 = vmatpush1.bf16.msra.mxu0 %v1991
  %2375 = vmatprep.subr.bf16.mxu0 %v1994
  %2376 = vmatpush1.bf16.msra.mxu0 %v1993
  %2377 = vmatprep.subr.bf16.mxu0 %v1996
  %2378 = vmatpush1.bf16.msra.mxu0 %v1995
  %2379 = vmatprep.subr.bf16.mxu0 %v1998
  %2380 = vmatpush1.bf16.msra.mxu0 %v1997
  %2381 = vmatprep.subr.bf16.mxu0 %v2000
  %2382 = vmatpush1.bf16.msra.mxu0 %v1999
  %2383 = vmatprep.subr.bf16.mxu0 %v2002
  %2384 = vmatpush1.bf16.msra.mxu0 %v2001
  %2385 = vmatprep.subr.bf16.mxu0 %v2004
  %2386 = vmatpush1.bf16.msra.mxu0 %v2003
  %2387 = vmatprep.subr.bf16.mxu0 %v2006
  %2388 = vmatpush1.bf16.msra.mxu0 %v2005
  %2389 = vmatprep.subr.bf16.mxu0 %v2008
  %2390 = vmatpush1.bf16.msra.mxu0 %v2007
  %2391 = vmatprep.subr.bf16.mxu0 %v2010
  %2392 = vmatpush1.bf16.msra.mxu0 %v2009
  %2393 = vmatprep.subr.bf16.mxu0 %v2012
  %2394 = vmatpush1.bf16.msra.mxu0 %v2011
  %2395 = vmatprep.subr.bf16.mxu0 %v2014
  %2396 = vmatpush1.bf16.msra.mxu0 %v2013
  %2397 = vmatprep.subr.bf16.mxu0 %v2016
  %2398 = vmatpush1.bf16.msra.mxu0 %v2015
  %2399 = vmatprep.subr.bf16.mxu0 %v2018
  %2400 = vmatpush1.bf16.msra.mxu0 %v2017
  %2401 = vmatprep.subr.bf16.mxu0 %v2020
  %2402 = vmatpush1.bf16.msra.mxu0 %v2019
  %2403 = vmatprep.subr.bf16.mxu0 %v2022
  %2404 = vmatpush1.bf16.msra.mxu0 %v2021
  %2405 = vmatprep.mubr.bf16.mxu0 %v2182
  %2406 = vmatmul.mubr.bf16.gmra.mrb[0].mxu0 %v2181
  %v2407 = vpop.f32.mrb[0].mxu0
  %v2408 = vadd.f32 %v2295, %v2407
  %v2409 = vpop.f32.mrb[0].mxu0
  %v2410 = vadd.f32 %v2297, %v2409
  %v2411 = vpop.f32.mrb[0].mxu0
  %v2412 = vadd.f32 %v2299, %v2411
  %v2413 = vpop.f32.mrb[0].mxu0
  %v2414 = vadd.f32 %v2301, %v2413
  %2415 = vmatprep.mubr.bf16.mxu0 %v2189
  %2416 = vmatmul.mubr.bf16.gmra.mrb[0].mxu0 %v2188
  %v2417 = vpop.f32.mrb[0].mxu0
  %v2418 = vadd.f32 %v2305, %v2417
  %v2419 = vpop.f32.mrb[0].mxu0
  %v2420 = vadd.f32 %v2307, %v2419
  %v2421 = vpop.f32.mrb[0].mxu0
  %v2422 = vadd.f32 %v2309, %v2421
  %v2423 = vpop.f32.mrb[0].mxu0
  %v2424 = vadd.f32 %v2311, %v2423
  %2425 = vmatprep.mubr.bf16.mxu0 %v2196
  %2426 = vmatmul.mubr.bf16.gmra.mrb[0].mxu0 %v2195
  %v2427 = vpop.f32.mrb[0].mxu0
  %v2428 = vadd.f32 %v2315, %v2427
  %v2429 = vpop.f32.mrb[0].mxu0
  %v2430 = vadd.f32 %v2317, %v2429
  %v2431 = vpop.f32.mrb[0].mxu0
  %v2432 = vadd.f32 %v2319, %v2431
  %v2433 = vpop.f32.mrb[0].mxu0
  %v2434 = vadd.f32 %v2321, %v2433
  %2435 = vmatprep.mubr.bf16.mxu0 %v2203
  %2436 = vmatmul.mubr.bf16.gmra.mrb[0].mxu0 %v2202
  %v2437 = vpop.f32.mrb[0].mxu0
  %v2438 = vadd.f32 %v2325, %v2437
  %v2439 = vpop.f32.mrb[0].mxu0
  %v2440 = vadd.f32 %v2327, %v2439
  %v2441 = vpop.f32.mrb[0].mxu0
  %v2442 = vadd.f32 %v2329, %v2441
  %v2443 = vpop.f32.mrb[0].mxu0
  %v2444 = vadd.f32 %v2331, %v2443
  %2445 = vmatprep.mubr.bf16.mxu0 %v2210
  %2446 = vmatmul.mubr.bf16.gmra.mrb[0].mxu0 %v2209
  %v2447 = vpop.f32.mrb[0].mxu0
  %v2448 = vadd.f32 %v2335, %v2447
  %v2449 = vpop.f32.mrb[0].mxu0
  %v2450 = vadd.f32 %v2337, %v2449
  %v2451 = vpop.f32.mrb[0].mxu0
  %v2452 = vadd.f32 %v2339, %v2451
  %v2453 = vpop.f32.mrb[0].mxu0
  %v2454 = vadd.f32 %v2341, %v2453
  %2455 = vmatprep.mubr.bf16.mxu0 %v2217
  %2456 = vmatmul.mubr.bf16.gmra.mrb[0].mxu0 %v2216
  %v2457 = vpop.f32.mrb[0].mxu0
  %v2458 = vadd.f32 %v2345, %v2457
  %v2459 = vpop.f32.mrb[0].mxu0
  %v2460 = vadd.f32 %v2347, %v2459
  %v2461 = vpop.f32.mrb[0].mxu0
  %v2462 = vadd.f32 %v2349, %v2461
  %v2463 = vpop.f32.mrb[0].mxu0
  %v2464 = vadd.f32 %v2351, %v2463
  %2465 = vmatprep.mubr.bf16.mxu0 %v2224
  %2466 = vmatmul.mubr.bf16.gmra.mrb[0].mxu0 %v2223
  %v2467 = vpop.f32.mrb[0].mxu0
  %v2468 = vadd.f32 %v2355, %v2467
  %v2469 = vpop.f32.mrb[0].mxu0
  %v2470 = vadd.f32 %v2357, %v2469
  %v2471 = vpop.f32.mrb[0].mxu0
  %v2472 = vadd.f32 %v2359, %v2471
  %v2473 = vpop.f32.mrb[0].mxu0
  %v2474 = vadd.f32 %v2361, %v2473
  %2475 = vmatprep.mubr.bf16.mxu0 %v2231
  %2476 = vmatmul.mubr.bf16.gmra.mrb[0].mxu0 %v2230
  %v2477 = vpop.f32.mrb[0].mxu0
  %v2478 = vadd.f32 %v2365, %v2477
  %v2479 = vpop.f32.mrb[0].mxu0
  %v2480 = vadd.f32 %v2367, %v2479
  %v2481 = vpop.f32.mrb[0].mxu0
  %v2482 = vadd.f32 %v2369, %v2481
  %v2483 = vpop.f32.mrb[0].mxu0
  %v2484 = vadd.f32 %v2371, %v2483
  %2485 = vdwg.mxu0
  %2486 = vmatprep.subr.bf16.mxu0 %v2024
  %2487 = vmatpush1.bf16.msra.mxu0 %v2023
  %2488 = vmatprep.subr.bf16.mxu0 %v2026
  %2489 = vmatpush1.bf16.msra.mxu0 %v2025
  %2490 = vmatprep.subr.bf16.mxu0 %v2028
  %2491 = vmatpush1.bf16.msra.mxu0 %v2027
  %2492 = vmatprep.subr.bf16.mxu0 %v2030
  %2493 = vmatpush1.bf16.msra.mxu0 %v2029
  %2494 = vmatprep.subr.bf16.mxu0 %v2032
  %2495 = vmatpush1.bf16.msra.mxu0 %v2031
  %2496 = vmatprep.subr.bf16.mxu0 %v2034
  %2497 = vmatpush1.bf16.msra.mxu0 %v2033
  %2498 = vmatprep.subr.bf16.mxu0 %v2036
  %2499 = vmatpush1.bf16.msra.mxu0 %v2035
  %2500 = vmatprep.subr.bf16.mxu0 %v2038
  %2501 = vmatpush1.bf16.msra.mxu0 %v2037
  %2502 = vmatprep.subr.bf16.mxu0 %v2040
  %2503 = vmatpush1.bf16.msra.mxu0 %v2039
  %2504 = vmatprep.subr.bf16.mxu0 %v2042
  %2505 = vmatpush1.bf16.msra.mxu0 %v2041
  %2506 = vmatprep.subr.bf16.mxu0 %v2044
  %2507 = vmatpush1.bf16.msra.mxu0 %v2043
  %2508 = vmatprep.subr.bf16.mxu0 %v2046
  %2509 = vmatpush1.bf16.msra.mxu0 %v2045
  %2510 = vmatprep.subr.bf16.mxu0 %v2048
  %2511 = vmatpush1.bf16.msra.mxu0 %v2047
  %2512 = vmatprep.subr.bf16.mxu0 %v2050
  %2513 = vmatpush1.bf16.msra.mxu0 %v2049
  %2514 = vmatprep.subr.bf16.mxu0 %v2052
  %2515 = vmatpush1.bf16.msra.mxu0 %v2051
  %2516 = vmatprep.subr.bf16.mxu0 %v2054
  %2517 = vmatpush1.bf16.msra.mxu0 %v2053
  %2518 = vmatprep.mubr.bf16.mxu0 %v2184
  %2519 = vmatmul.mubr.bf16.gmra.mrb[0].mxu0 %v2183
  %v2520 = vpop.f32.mrb[0].mxu0
  %v2521 = vadd.f32 %v2408, %v2520
  %v2522 = vpop.f32.mrb[0].mxu0
  %v2523 = vadd.f32 %v2410, %v2522
  %v2524 = vpop.f32.mrb[0].mxu0
  %v2525 = vadd.f32 %v2412, %v2524
  %v2526 = vpop.f32.mrb[0].mxu0
  %v2527 = vadd.f32 %v2414, %v2526
  %2528 = vmatprep.mubr.bf16.mxu0 %v2191
  %2529 = vmatmul.mubr.bf16.gmra.mrb[0].mxu0 %v2190
  %v2530 = vpop.f32.mrb[0].mxu0
  %v2531 = vadd.f32 %v2418, %v2530
  %v2532 = vpop.f32.mrb[0].mxu0
  %v2533 = vadd.f32 %v2420, %v2532
  %v2534 = vpop.f32.mrb[0].mxu0
  %v2535 = vadd.f32 %v2422, %v2534
  %v2536 = vpop.f32.mrb[0].mxu0
  %v2537 = vadd.f32 %v2424, %v2536
  %2538 = vmatprep.mubr.bf16.mxu0 %v2198
  %2539 = vmatmul.mubr.bf16.gmra.mrb[0].mxu0 %v2197
  %v2540 = vpop.f32.mrb[0].mxu0
  %v2541 = vadd.f32 %v2428, %v2540
  %v2542 = vpop.f32.mrb[0].mxu0
  %v2543 = vadd.f32 %v2430, %v2542
  %v2544 = vpop.f32.mrb[0].mxu0
  %v2545 = vadd.f32 %v2432, %v2544
  %v2546 = vpop.f32.mrb[0].mxu0
  %v2547 = vadd.f32 %v2434, %v2546
  %2548 = vmatprep.mubr.bf16.mxu0 %v2205
  %2549 = vmatmul.mubr.bf16.gmra.mrb[0].mxu0 %v2204
  %v2550 = vpop.f32.mrb[0].mxu0
  %v2551 = vadd.f32 %v2438, %v2550
  %v2552 = vpop.f32.mrb[0].mxu0
  %v2553 = vadd.f32 %v2440, %v2552
  %v2554 = vpop.f32.mrb[0].mxu0
  %v2555 = vadd.f32 %v2442, %v2554
  %v2556 = vpop.f32.mrb[0].mxu0
  %v2557 = vadd.f32 %v2444, %v2556
  %2558 = vmatprep.mubr.bf16.mxu0 %v2212
  %2559 = vmatmul.mubr.bf16.gmra.mrb[0].mxu0 %v2211
  %v2560 = vpop.f32.mrb[0].mxu0
  %v2561 = vadd.f32 %v2448, %v2560
  %v2562 = vpop.f32.mrb[0].mxu0
  %v2563 = vadd.f32 %v2450, %v2562
  %v2564 = vpop.f32.mrb[0].mxu0
  %v2565 = vadd.f32 %v2452, %v2564
  %v2566 = vpop.f32.mrb[0].mxu0
  %v2567 = vadd.f32 %v2454, %v2566
  %2568 = vmatprep.mubr.bf16.mxu0 %v2219
  %2569 = vmatmul.mubr.bf16.gmra.mrb[0].mxu0 %v2218
  %v2570 = vpop.f32.mrb[0].mxu0
  %v2571 = vadd.f32 %v2458, %v2570
  %v2572 = vpop.f32.mrb[0].mxu0
  %v2573 = vadd.f32 %v2460, %v2572
  %v2574 = vpop.f32.mrb[0].mxu0
  %v2575 = vadd.f32 %v2462, %v2574
  %v2576 = vpop.f32.mrb[0].mxu0
  %v2577 = vadd.f32 %v2464, %v2576
  %2578 = vmatprep.mubr.bf16.mxu0 %v2226
  %2579 = vmatmul.mubr.bf16.gmra.mrb[0].mxu0 %v2225
  %v2580 = vpop.f32.mrb[0].mxu0
  %v2581 = vadd.f32 %v2468, %v2580
  %v2582 = vpop.f32.mrb[0].mxu0
  %v2583 = vadd.f32 %v2470, %v2582
  %v2584 = vpop.f32.mrb[0].mxu0
  %v2585 = vadd.f32 %v2472, %v2584
  %v2586 = vpop.f32.mrb[0].mxu0
  %v2587 = vadd.f32 %v2474, %v2586
  %2588 = vmatprep.mubr.bf16.mxu0 %v2233
  %2589 = vmatmul.mubr.bf16.gmra.mrb[0].mxu0 %v2232
  %v2590 = vpop.f32.mrb[0].mxu0
  %v2591 = vadd.f32 %v2478, %v2590
  %v2592 = vpop.f32.mrb[0].mxu0
  %v2593 = vadd.f32 %v2480, %v2592
  %v2594 = vpop.f32.mrb[0].mxu0
  %v2595 = vadd.f32 %v2482, %v2594
  %v2596 = vpop.f32.mrb[0].mxu0
  %v2597 = vadd.f32 %v2484, %v2596
  %2598 = vdwg.mxu0
  %2599 = vmatprep.subr.bf16.mxu0 %v2056
  %2600 = vmatpush1.bf16.msra.mxu0 %v2055
  %2601 = vmatprep.subr.bf16.mxu0 %v2058
  %2602 = vmatpush1.bf16.msra.mxu0 %v2057
  %2603 = vmatprep.subr.bf16.mxu0 %v2060
  %2604 = vmatpush1.bf16.msra.mxu0 %v2059
  %2605 = vmatprep.subr.bf16.mxu0 %v2062
  %2606 = vmatpush1.bf16.msra.mxu0 %v2061
  %2607 = vmatprep.subr.bf16.mxu0 %v2064
  %2608 = vmatpush1.bf16.msra.mxu0 %v2063
  %2609 = vmatprep.subr.bf16.mxu0 %v2066
  %2610 = vmatpush1.bf16.msra.mxu0 %v2065
  %2611 = vmatprep.subr.bf16.mxu0 0
  %2612 = vmatpush1.bf16.msra.mxu0 0
  %2613 = vmatprep.subr.bf16.mxu0 0
  %2614 = vmatpush1.bf16.msra.mxu0 0
  %2615 = vmatprep.subr.bf16.mxu0 0
  %2616 = vmatpush1.bf16.msra.mxu0 0
  %2617 = vmatprep.subr.bf16.mxu0 0
  %2618 = vmatpush1.bf16.msra.mxu0 0
  %2619 = vmatprep.subr.bf16.mxu0 0
  %2620 = vmatpush1.bf16.msra.mxu0 0
  %2621 = vmatprep.subr.bf16.mxu0 0
  %2622 = vmatpush1.bf16.msra.mxu0 0
  %2623 = vmatprep.subr.bf16.mxu0 0
  %2624 = vmatpush1.bf16.msra.mxu0 0
  %2625 = vmatprep.subr.bf16.mxu0 0
  %2626 = vmatpush1.bf16.msra.mxu0 0
  %2627 = vmatprep.subr.bf16.mxu0 0
  %2628 = vmatpush1.bf16.msra.mxu0 0
  %2629 = vmatprep.subr.bf16.mxu0 0
  %2630 = vmatpush1.bf16.msra.mxu0 0
  %2631 = vmatprep.mubr.bf16.mxu0 0
  %2632 = vmatmul.mubr.bf16.gmra.mrb[0].mxu0 %v2237
  %v2633 = vpop.f32.mrb[0].mxu0
  %v2634 = vadd.f32 %v2521, %v2633
  %v2635 = vpop.f32.mrb[0].mxu0
  %v2636 = vadd.f32 %v2523, %v2635
  %v2637 = vpop.f32.mrb[0].mxu0
  %v2638 = vadd.f32 %v2525, %v2637
  %v2639 = vpop.f32.mrb[0].mxu0
  %v2640 = vadd.f32 %v2527, %v2639
  %2641 = vmatprep.mubr.bf16.mxu0 0
  %2642 = vmatmul.mubr.bf16.gmra.mrb[0].mxu0 %v2240
  %v2643 = vpop.f32.mrb[0].mxu0
  %v2644 = vadd.f32 %v2531, %v2643
  %v2645 = vpop.f32.mrb[0].mxu0
  %v2646 = vadd.f32 %v2533, %v2645
  %v2647 = vpop.f32.mrb[0].mxu0
  %v2648 = vadd.f32 %v2535, %v2647
  %v2649 = vpop.f32.mrb[0].mxu0
  %v2650 = vadd.f32 %v2537, %v2649
  %2651 = vmatprep.mubr.bf16.mxu0 0
  %2652 = vmatmul.mubr.bf16.gmra.mrb[0].mxu0 %v2243
  %v2653 = vpop.f32.mrb[0].mxu0
  %v2654 = vadd.f32 %v2541, %v2653
  %v2655 = vpop.f32.mrb[0].mxu0
  %v2656 = vadd.f32 %v2543, %v2655
  %v2657 = vpop.f32.mrb[0].mxu0
  %v2658 = vadd.f32 %v2545, %v2657
  %v2659 = vpop.f32.mrb[0].mxu0
  %v2660 = vadd.f32 %v2547, %v2659
  %2661 = vmatprep.mubr.bf16.mxu0 0
  %2662 = vmatmul.mubr.bf16.gmra.mrb[0].mxu0 %v2246
  %v2663 = vpop.f32.mrb[0].mxu0
  %v2664 = vadd.f32 %v2551, %v2663
  %v2665 = vpop.f32.mrb[0].mxu0
  %v2666 = vadd.f32 %v2553, %v2665
  %v2667 = vpop.f32.mrb[0].mxu0
  %v2668 = vadd.f32 %v2555, %v2667
  %v2669 = vpop.f32.mrb[0].mxu0
  %v2670 = vadd.f32 %v2557, %v2669
  %2671 = vmatprep.mubr.bf16.mxu0 0
  %2672 = vmatmul.mubr.bf16.gmra.mrb[0].mxu0 %v2249
  %v2673 = vpop.f32.mrb[0].mxu0
  %v2674 = vadd.f32 %v2561, %v2673
  %v2675 = vpop.f32.mrb[0].mxu0
  %v2676 = vadd.f32 %v2563, %v2675
  %v2677 = vpop.f32.mrb[0].mxu0
  %v2678 = vadd.f32 %v2565, %v2677
  %v2679 = vpop.f32.mrb[0].mxu0
  %v2680 = vadd.f32 %v2567, %v2679
  %2681 = vmatprep.mubr.bf16.mxu0 0
  %2682 = vmatmul.mubr.bf16.gmra.mrb[0].mxu0 %v2252
  %v2683 = vpop.f32.mrb[0].mxu0
  %v2684 = vadd.f32 %v2571, %v2683
  %v2685 = vpop.f32.mrb[0].mxu0
  %v2686 = vadd.f32 %v2573, %v2685
  %v2687 = vpop.f32.mrb[0].mxu0
  %v2688 = vadd.f32 %v2575, %v2687
  %v2689 = vpop.f32.mrb[0].mxu0
  %v2690 = vadd.f32 %v2577, %v2689
  %2691 = vmatprep.mubr.bf16.mxu0 0
  %2692 = vmatmul.mubr.bf16.gmra.mrb[0].mxu0 %v2255
  %v2693 = vpop.f32.mrb[0].mxu0
  %v2694 = vadd.f32 %v2581, %v2693
  %v2695 = vpop.f32.mrb[0].mxu0
  %v2696 = vadd.f32 %v2583, %v2695
  %v2697 = vpop.f32.mrb[0].mxu0
  %v2698 = vadd.f32 %v2585, %v2697
  %v2699 = vpop.f32.mrb[0].mxu0
  %v2700 = vadd.f32 %v2587, %v2699
  %2701 = vmatprep.mubr.bf16.mxu0 0
  %2702 = vmatmul.mubr.bf16.gmra.mrb[0].mxu0 %v2258
  %v2703 = vpop.f32.mrb[0].mxu0
  %v2704 = vadd.f32 %v2591, %v2703
  %v2705 = vpop.f32.mrb[0].mxu0
  %v2706 = vadd.f32 %v2593, %v2705
  %v2707 = vpop.f32.mrb[0].mxu0
  %v2708 = vadd.f32 %v2595, %v2707
  %v2709 = vpop.f32.mrb[0].mxu0
  %v2710 = vadd.f32 %v2597, %v2709
  %2711 = vdwg.mxu0
  %2712 = vst [vmem:[%s3] sm:$0xff] %v2634
  %vm2713 = vcmask 556032
  %2714 = vst.msk [vmem:[%s3 + $0x8] sm:$0xff] %vm2713, %v2636
  %2715 = vst [vmem:[%s3 + $0x10] sm:$0xff] %v2638
  %2716 = vst.msk [vmem:[%s3 + $0x18] sm:$0xff] %vm2713, %v2640
  %2717 = vst [vmem:[%s3 + $0x20] sm:$0xff] %v2644
  %2718 = vst.msk [vmem:[%s3 + $0x28] sm:$0xff] %vm2713, %v2646
  %2719 = vst [vmem:[%s3 + $0x30] sm:$0xff] %v2648
  %2720 = vst.msk [vmem:[%s3 + $0x38] sm:$0xff] %vm2713, %v2650
  %2721 = vst [vmem:[%s3 + $0x40] sm:$0xff] %v2654
  %2722 = vst.msk [vmem:[%s3 + $0x48] sm:$0xff] %vm2713, %v2656
  %2723 = vst [vmem:[%s3 + $0x50] sm:$0xff] %v2658
  %2724 = vst.msk [vmem:[%s3 + $0x58] sm:$0xff] %vm2713, %v2660
  %2725 = vst [vmem:[%s3 + $0x60] sm:$0xff] %v2664
  %2726 = vst.msk [vmem:[%s3 + $0x68] sm:$0xff] %vm2713, %v2666
  %2727 = vst [vmem:[%s3 + $0x70] sm:$0xff] %v2668
  %2728 = vst.msk [vmem:[%s3 + $0x78] sm:$0xff] %vm2713, %v2670
  %2729 = vst [vmem:[%s3 + $0x80] sm:$0xff] %v2674
  %2730 = vst.msk [vmem:[%s3 + $0x88] sm:$0xff] %vm2713, %v2676
  %2731 = vst [vmem:[%s3 + $0x90] sm:$0xff] %v2678
  %2732 = vst.msk [vmem:[%s3 + $0x98] sm:$0xff] %vm2713, %v2680
  %2733 = vst [vmem:[%s3 + $0xa0] sm:$0xff] %v2684
  %2734 = vst.msk [vmem:[%s3 + $0xa8] sm:$0xff] %vm2713, %v2686
  %2735 = vst [vmem:[%s3 + $0xb0] sm:$0xff] %v2688
  %2736 = vst.msk [vmem:[%s3 + $0xb8] sm:$0xff] %vm2713, %v2690
  %2737 = vst [vmem:[%s3 + $0xc0] sm:$0xff] %v2694
  %2738 = vst.msk [vmem:[%s3 + $0xc8] sm:$0xff] %vm2713, %v2696
  %2739 = vst [vmem:[%s3 + $0xd0] sm:$0xff] %v2698
  %2740 = vst.msk [vmem:[%s3 + $0xd8] sm:$0xff] %vm2713, %v2700
  %2741 = vst [vmem:[%s3 + $0xe0] sm:$0xff] %v2704
  %2742 = vst.msk [vmem:[%s3 + $0xe8] sm:$0xff] %vm2713, %v2706
  %2743 = vst [vmem:[%s3 + $0xf0] sm:$0xff] %v2708
  %2744 = vst.msk [vmem:[%s3 + $0xf8] sm:$0xff] %vm2713, %v2710
  // Predicated region
  $region14: #{bn_relu_conv1x1.1} parent=0 // pred_check
    _
  $region15: #{bn_relu_conv1x1.1} parent=0 // pred_check_branch
    %2746 = sbr.rel (0) target = $region17
  $region16: #{bn_relu_conv1x1.1} parent=0 // pred_region
    _
  $region17: #{bn_relu_conv1x1.1} parent=0 // pred_fallthru
    _
  // Predicated region
  $region18: #{bn_relu_conv1x1.1} parent=0 // pred_check
    _
  $region19: #{bn_relu_conv1x1.1} parent=0 // pred_check_branch
    %2748 = sbr.rel (0) target = $region21
  $region20: #{bn_relu_conv1x1.1} parent=0 // pred_region
    _
  $region21: #{bn_relu_conv1x1.1} parent=0 // pred_fallthru
    _

</llo_original>
